<compile_context>
chip_gen: v6e
topology: v6e:2x2x1
jax: 0.10.0
libtpu: 0.0.40
codegen_flags: <defaults>
</compile_context>

<pallas_src>
import functools

import jax
import jax.numpy as jnp
from jax import lax
from jax.experimental import pallas as pl
from jax.experimental.pallas import tpu as pltpu


def _round_up(x, m):
    return (x + m - 1) // m * m


def _basic_block_kernel(x_ref, w1_ref, w2_ref, b1_ref, b2_ref, m_ref, o_ref,
                        col_ref, *, shifts, cin):
    """One batch block: conv3x3 -> bn -> relu -> conv3x3 -> bn -> +res -> relu."""

    def im2col(z):
        # z: (C, L) f32 in the padded lane layout.  Stack the 9 tap-shifted
        # copies along the sublane axis into the bf16 scratch -> (9*C, L).
        # Pure rolls: edge handling comes from the zero-padding ring, so no
        # per-tap masks are needed; each tap is cast to bf16 at the store.
        # TODO(synk): on v6e/v7x the roll itself could run on bf16 data (half
        # the XLU traffic); kept f32 here so one kernel lowers on v5e too.
        for t, s in enumerate(shifts):            # static unroll over taps
            tap = z if s == 0 else pltpu.roll(z, shift=s, axis=1)
            col_ref[pl.ds(t * cin, cin), :] = tap.astype(jnp.bfloat16)
        return col_ref[...]

    # conv1 (BN1 scale folded into w1) -> bias -> ReLU     (single MXU matmul)
    h = jnp.dot(w1_ref[...], im2col(x_ref[...]),
                preferred_element_type=jnp.float32)
    h = jnp.maximum(h + b1_ref[...], 0.0)
    # conv2 must see zero padding: re-zero the ring/tail lanes of h.  This is
    # the only masking left in the kernel (one (C, L) multiply per step).
    h = h * m_ref[...]

    # conv2 (BN2 scale folded into w2) -> bias -> residual -> ReLU
    h2 = jnp.dot(w2_ref[...], im2col(h), preferred_element_type=jnp.float32)
    # Re-read x_ref for the residual instead of keeping the value live across
    # both matmuls (the block is already resident in VMEM).
    o_ref[...] = jnp.maximum(h2 + b2_ref[...] + x_ref[...], 0.0)


def _tpu_defaults():
    """Per-generation sizing: (vmem_limit_bytes, lane_cap, min_grid_steps)."""
    is_v7 = False
    try:
        kind = jax.devices()[0].device_kind.lower()
        is_v7 = ("v7" in kind) or ("7x" in kind)
    except Exception:
        pass
    vmem_cap = 64 * 1024 * 1024 if is_v7 else 128 * 1024 * 1024
    try:
        vmem_cap = int(pltpu.get_tpu_info().vmem_capacity_bytes)
    except Exception:
        pass
    min_steps = 2 if is_v7 else 1            # only v7x has 2 TensorCores/chip
    if vmem_cap <= 64 * 1024 * 1024:         # v7x-class VMEM
        return 48 * 1024 * 1024, 4096, min_steps
    return 100 * 1024 * 1024, 8192, min_steps


def _choose_batch_block(N, Cin, Cm, Ps, *, lane_cap, vmem_budget, min_steps):
    """Largest batch_block (images per grid step) that fits the budgets."""

    def est_vmem(lp):
        return (2 * (Cin + Cm) * lp * 4          # double-buffered x/out blocks
                + 9 * Cin * lp * 2               # bf16 im2col scratch
                + 2 * lp * 4                     # mask block
                + 2 * 9 * Cin * (Cin + Cm) * 2   # bf16 weight blocks
                + 8 * Cm * 4)                    # biases

    best_bb, best_lp = 1, _round_up(Ps, 128)
    for bb in range(1, N + 1):
        if N % bb:
            continue
        if N // bb < min_steps:
            continue
        lp = _round_up(bb * Ps, 128)             # lane-dense, full-tile stores
        if lp > lane_cap or est_vmem(lp) > vmem_budget:
            continue
        best_bb, best_lp = bb, lp
    return best_bb, best_lp


def basic_block_forward(x, params, *, eps=1e-5, batch_block=None):
    """BasicBlock forward (stride=1, downsample=None). x: (N, C, H, W) f32."""
    (w1, g1, be1, m1, v1, w2, g2, be2, m2, v2) = params
    N, Cin, H, W = x.shape
    Cm = w1.shape[0]
    assert Cm == Cin, "identity residual requires inplanes == planes"

    Hp, Wp = H + 2, W + 2                      # zero-padding ring per image
    Ps = Hp * Wp                               # lanes per padded image

    vmem_limit, lane_cap, min_steps = _tpu_defaults()
    if batch_block is None:
        batch_block, Lp = _choose_batch_block(
            N, Cin, Cm, Ps, lane_cap=lane_cap,
            vmem_budget=(vmem_limit * 3) // 4, min_steps=min_steps)
    else:
        assert N % batch_block == 0
        Lp = _round_up(batch_block * Ps, 128)
    G = N // batch_block
    tail = Lp - batch_block * Ps

    # ---- plain-JAX glue -------------------------------------------------
    # Pad each image with a zero ring; channels on sublanes; the padded pixels
    # of batch_block images (+ zero tail rounding the width up to a multiple
    # of 128) on the lane axis.
    xp = jnp.pad(x.astype(jnp.float32), ((0, 0), (0, 0), (1, 1), (1, 1)))
    xp = jnp.transpose(xp.reshape(N, Cin, Ps), (1, 0, 2))       # (C, N, Ps)
    xp = xp.reshape(Cin, G, batch_block * Ps)
    if tail:
        xp = jnp.pad(xp, ((0, 0), (0, 0), (0, tail)))
    x_lanes = xp.reshape(Cin, G * Lp)

    # Fold eval-mode BN scale into the conv weights (im2col layout
    # (Cout, 9*Cin), tap-major to match the kernel's stacking); keep only the
    # per-channel bias; cast weights to bf16 for the MXU.
    inv1 = g1 / jnp.sqrt(v1 + eps)
    inv2 = g2 / jnp.sqrt(v2 + eps)
    w1_mat = (jnp.transpose(w1, (0, 2, 3, 1)).reshape(Cm, 9 * Cin)
              * inv1[:, None]).astype(jnp.bfloat16)
    w2_mat = (jnp.transpose(w2, (0, 2, 3, 1)).reshape(Cm, 9 * Cm)
              * inv2[:, None]).astype(jnp.bfloat16)
    b1 = (be1 - m1 * inv1).reshape(Cm, 1).astype(jnp.float32)
    b2 = (be2 - m2 * inv2).reshape(Cm, 1).astype(jnp.float32)

    # Interior mask (1 on real pixels, 0 on padding ring / tail lanes): used
    # once per step to re-zero conv1's output padding before conv2.
    rr = jnp.arange(Hp)[:, None]
    cc = jnp.arange(Wp)[None, :]
    valid = ((rr >= 1) & (rr <= H) & (cc >= 1) & (cc <= W)).reshape(Ps)
    mask = jnp.concatenate(
        [jnp.tile(valid, batch_block), jnp.zeros((tail,), dtype=bool)]
    ).reshape(1, Lp).astype(jnp.float32)

    # Roll amounts for the 9 taps over the padded lane layout.  Interior
    # output pixels never read past their own image's padding ring, so wraps
    # across image boundaries only hit ring/tail lanes we discard anyway.
    shifts = tuple((-(dh * Wp + dw)) % Lp
                   for dh in (-1, 0, 1) for dw in (-1, 0, 1))

    kernel = functools.partial(_basic_block_kernel, shifts=shifts, cin=Cin)
    out_lanes = pl.pallas_call(
        kernel,
        out_shape=jax.ShapeDtypeStruct((Cm, G * Lp), jnp.float32),
        grid=(G,),
        in_specs=[
            pl.BlockSpec((Cin, Lp), lambda n: (0, n)),        # x block
            pl.BlockSpec((Cm, 9 * Cin), lambda n: (0, 0)),    # conv1 weights
            pl.BlockSpec((Cm, 9 * Cm), lambda n: (0, 0)),     # conv2 weights
            pl.BlockSpec((Cm, 1), lambda n: (0, 0)),          # bn1 bias
            pl.BlockSpec((Cm, 1), lambda n: (0, 0)),          # bn2 bias
            pl.BlockSpec((1, Lp), lambda n: (0, 0)),          # interior mask
        ],
        out_specs=pl.BlockSpec((Cm, Lp), lambda n: (0, n)),
        scratch_shapes=[pltpu.VMEM((9 * Cin, Lp), jnp.bfloat16)],  # im2col
        compiler_params=pltpu.CompilerParams(
            dimension_semantics=("parallel",),
            vmem_limit_bytes=vmem_limit),
    )(x_lanes, w1_mat, w2_mat, b1, b2, mask)

    # Drop tail + padding-ring lanes and go back to (N, C, H, W).
    out = out_lanes.reshape(Cm, G, Lp)[:, :, :batch_block * Ps]
    out = out.reshape(Cm, N, Hp, Wp)[:, :, 1:H + 1, 1:W + 1]
    return jnp.transpose(out, (1, 0, 2, 3))


def _reference_forward(x, params, eps=1e-5):
    """Pure-JAX f32 reference of the same forward pass (for verification)."""
    (w1, g1, be1, m1, v1, w2, g2, be2, m2, v2) = params

    def conv(z, w):
        return lax.conv_general_dilated(
            z, w, window_strides=(1, 1), padding=((1, 1), (1, 1)),
            dimension_numbers=("NCHW", "OIHW", "NCHW"),
            precision=lax.Precision.HIGHEST)

    def bn(z, g, b, m, v):
        g, b, m, v = (t[None, :, None, None] for t in (g, b, m, v))
        return (z - m) / jnp.sqrt(v + eps) * g + b

    out = jax.nn.relu(bn(conv(x, w1), g1, be1, m1, v1))
    out = bn(conv(out, w2), g2, be2, m2, v2)
    return jax.nn.relu(out + x)


if __name__ == "__main__":
    N, C, H, W = 2, 4, 16, 16          # inplanes == planes == 4, stride=1
    key = jax.random.PRNGKey(0)
    ks = jax.random.split(key, 8)

    x = jax.random.normal(ks[0], (N, C, H, W), jnp.float32)
    w1 = 0.1 * jax.random.normal(ks[1], (C, C, 3, 3), jnp.float32)
    w2 = 0.1 * jax.random.normal(ks[2], (C, C, 3, 3), jnp.float32)
    g1 = 1.0 + 0.1 * jax.random.normal(ks[3], (C,), jnp.float32)
    be1 = 0.1 * jax.random.normal(ks[4], (C,), jnp.float32)
    m1 = 0.1 * jax.random.normal(ks[5], (C,), jnp.float32)
    v1 = 0.5 + jnp.abs(jax.random.normal(ks[6], (C,), jnp.float32))
    g2 = 1.0 + 0.05 * jnp.arange(C, dtype=jnp.float32)
    be2 = 0.02 * jnp.arange(C, dtype=jnp.float32)
    m2 = 0.1 * jax.random.normal(ks[7], (C,), jnp.float32)
    v2 = 0.75 + 0.1 * jnp.arange(C, dtype=jnp.float32)

    params = (w1, g1, be1, m1, v1, w2, g2, be2, m2, v2)

    out = basic_block_forward(x, params)
    out = jax.block_until_ready(out)

    ref = _reference_forward(x, params)
    assert out.shape == (N, C, H, W)
    # Matmul operands are bf16 on the MXU (accumulation and all elementwise
    # math remain f32), hence the loosened tolerance vs a pure-f32 kernel.
    assert jnp.allclose(out, ref, atol=5e-2, rtol=5e-2), \
        f"max abs err = {jnp.max(jnp.abs(out - ref))}"

    print("KERNEL_OK")
</pallas_src>

<mosaic_0001>
module attributes {stable_mosaic.version = 11 : i64} {
  func.func @_basic_block_kernel(%arg0: i32, %arg1: memref<4x768xf32, #tpu.memory_space<vmem>>, %arg2: memref<4x36xbf16, #tpu.memory_space<vmem>>, %arg3: memref<4x36xbf16, #tpu.memory_space<vmem>>, %arg4: memref<4x1xf32, #tpu.memory_space<vmem>>, %arg5: memref<4x1xf32, #tpu.memory_space<vmem>>, %arg6: memref<1x768xf32, #tpu.memory_space<vmem>>, %arg7: memref<4x768xf32, #tpu.memory_space<vmem>>, %arg8: memref<36x768xbf16, #tpu.memory_space<vmem>>) attributes {dimension_semantics = [#tpu.dimension_semantics<parallel>], iteration_bounds = array<i64: 1>, scalar_prefetch = 0 : i64, scratch_operands = 1 : i64, tpu.core_type = #tpu.core_type<tc>, window_params = [{transform_indices = @transform_0, window_bounds = array<i64: 4, 768>}, {pipeline_mode = #tpu.pipeline_mode<synchronous>, transform_indices = @transform_1, window_bounds = array<i64: 4, 36>}, {pipeline_mode = #tpu.pipeline_mode<synchronous>, transform_indices = @transform_2, window_bounds = array<i64: 4, 36>}, {pipeline_mode = #tpu.pipeline_mode<synchronous>, transform_indices = @transform_3, window_bounds = array<i64: 4, 1>}, {pipeline_mode = #tpu.pipeline_mode<synchronous>, transform_indices = @transform_4, window_bounds = array<i64: 4, 1>}, {pipeline_mode = #tpu.pipeline_mode<synchronous>, transform_indices = @transform_5, window_bounds = array<i64: 1, 768>}, {transform_indices = @transform_6, window_bounds = array<i64: 4, 768>}]} {
    %c0 = arith.constant 0 : index
    %c0_0 = arith.constant 0 : index
    %0 = vector.load %arg2[%c0, %c0_0] : memref<4x36xbf16, #tpu.memory_space<vmem>>, vector<4x36xbf16>
    %c0_1 = arith.constant 0 : index
    %c0_2 = arith.constant 0 : index
    %1 = vector.load %arg1[%c0_1, %c0_2] : memref<4x768xf32, #tpu.memory_space<vmem>>, vector<4x768xf32>
    %c19_i32 = arith.constant 19 : i32
    %2 = tpu.dynamic_rotate %1 by %c19_i32 dim 1 : vector<4x768xf32>, i32 -> vector<4x768xf32>
    %3 = arith.truncf %2 : vector<4x768xf32> to vector<4x768xbf16>
    %c0_3 = arith.constant 0 : index
    %c0_4 = arith.constant 0 : index
    %4 = vector.load %arg8[%c0_3, %c0_4] : memref<36x768xbf16, #tpu.memory_space<vmem>>, vector<4x768xbf16>
    tpu.vector_store %arg8[%c0_3, %c0_4], %3 {strides = array<i32>} : memref<36x768xbf16, #tpu.memory_space<vmem>>, vector<4x768xbf16>,
    %c18_i32 = arith.constant 18 : i32
    %5 = tpu.dynamic_rotate %1 by %c18_i32 dim 1 : vector<4x768xf32>, i32 -> vector<4x768xf32>
    %6 = arith.truncf %5 : vector<4x768xf32> to vector<4x768xbf16>
    %c4 = arith.constant 4 : index
    %c0_5 = arith.constant 0 : index
    %7 = vector.load %arg8[%c4, %c0_5] : memref<36x768xbf16, #tpu.memory_space<vmem>>, vector<4x768xbf16>
    tpu.vector_store %arg8[%c4, %c0_5], %6 {strides = array<i32>} : memref<36x768xbf16, #tpu.memory_space<vmem>>, vector<4x768xbf16>,
    %c17_i32 = arith.constant 17 : i32
    %8 = tpu.dynamic_rotate %1 by %c17_i32 dim 1 : vector<4x768xf32>, i32 -> vector<4x768xf32>
    %9 = arith.truncf %8 : vector<4x768xf32> to vector<4x768xbf16>
    %c8 = arith.constant 8 : index
    %c0_6 = arith.constant 0 : index
    %10 = vector.load %arg8[%c8, %c0_6] : memref<36x768xbf16, #tpu.memory_space<vmem>>, vector<4x768xbf16>
    tpu.vector_store %arg8[%c8, %c0_6], %9 {strides = array<i32>} : memref<36x768xbf16, #tpu.memory_space<vmem>>, vector<4x768xbf16>,
    %c1_i32 = arith.constant 1 : i32
    %11 = tpu.dynamic_rotate %1 by %c1_i32 dim 1 : vector<4x768xf32>, i32 -> vector<4x768xf32>
    %12 = arith.truncf %11 : vector<4x768xf32> to vector<4x768xbf16>
    %c12 = arith.constant 12 : index
    %c0_7 = arith.constant 0 : index
    %13 = vector.load %arg8[%c12, %c0_7] : memref<36x768xbf16, #tpu.memory_space<vmem>>, vector<4x768xbf16>
    tpu.vector_store %arg8[%c12, %c0_7], %12 {strides = array<i32>} : memref<36x768xbf16, #tpu.memory_space<vmem>>, vector<4x768xbf16>,
    %14 = arith.truncf %1 : vector<4x768xf32> to vector<4x768xbf16>
    %c16 = arith.constant 16 : index
    %c0_8 = arith.constant 0 : index
    %15 = vector.load %arg8[%c16, %c0_8] : memref<36x768xbf16, #tpu.memory_space<vmem>>, vector<4x768xbf16>
    tpu.vector_store %arg8[%c16, %c0_8], %14 {strides = array<i32>} : memref<36x768xbf16, #tpu.memory_space<vmem>>, vector<4x768xbf16>,
    %c767_i32 = arith.constant 767 : i32
    %16 = tpu.dynamic_rotate %1 by %c767_i32 dim 1 : vector<4x768xf32>, i32 -> vector<4x768xf32>
    %17 = arith.truncf %16 : vector<4x768xf32> to vector<4x768xbf16>
    %c20 = arith.constant 20 : index
    %c0_9 = arith.constant 0 : index
    %18 = vector.load %arg8[%c20, %c0_9] : memref<36x768xbf16, #tpu.memory_space<vmem>>, vector<4x768xbf16>
    tpu.vector_store %arg8[%c20, %c0_9], %17 {strides = array<i32>} : memref<36x768xbf16, #tpu.memory_space<vmem>>, vector<4x768xbf16>,
    %c751_i32 = arith.constant 751 : i32
    %19 = tpu.dynamic_rotate %1 by %c751_i32 dim 1 : vector<4x768xf32>, i32 -> vector<4x768xf32>
    %20 = arith.truncf %19 : vector<4x768xf32> to vector<4x768xbf16>
    %c24 = arith.constant 24 : index
    %c0_10 = arith.constant 0 : index
    %21 = vector.load %arg8[%c24, %c0_10] : memref<36x768xbf16, #tpu.memory_space<vmem>>, vector<4x768xbf16>
    tpu.vector_store %arg8[%c24, %c0_10], %20 {strides = array<i32>} : memref<36x768xbf16, #tpu.memory_space<vmem>>, vector<4x768xbf16>,
    %c750_i32 = arith.constant 750 : i32
    %22 = tpu.dynamic_rotate %1 by %c750_i32 dim 1 : vector<4x768xf32>, i32 -> vector<4x768xf32>
    %23 = arith.truncf %22 : vector<4x768xf32> to vector<4x768xbf16>
    %c28 = arith.constant 28 : index
    %c0_11 = arith.constant 0 : index
    %24 = vector.load %arg8[%c28, %c0_11] : memref<36x768xbf16, #tpu.memory_space<vmem>>, vector<4x768xbf16>
    tpu.vector_store %arg8[%c28, %c0_11], %23 {strides = array<i32>} : memref<36x768xbf16, #tpu.memory_space<vmem>>, vector<4x768xbf16>,
    %c749_i32 = arith.constant 749 : i32
    %25 = tpu.dynamic_rotate %1 by %c749_i32 dim 1 : vector<4x768xf32>, i32 -> vector<4x768xf32>
    %26 = arith.truncf %25 : vector<4x768xf32> to vector<4x768xbf16>
    %c32 = arith.constant 32 : index
    %c0_12 = arith.constant 0 : index
    %27 = vector.load %arg8[%c32, %c0_12] : memref<36x768xbf16, #tpu.memory_space<vmem>>, vector<4x768xbf16>
    tpu.vector_store %arg8[%c32, %c0_12], %26 {strides = array<i32>} : memref<36x768xbf16, #tpu.memory_space<vmem>>, vector<4x768xbf16>,
    %c0_13 = arith.constant 0 : index
    %c0_14 = arith.constant 0 : index
    %28 = vector.load %arg8[%c0_13, %c0_14] : memref<36x768xbf16, #tpu.memory_space<vmem>>, vector<36x768xbf16>
    %cst = arith.constant dense<0.000000e+00> : vector<4x768xf32>
    %29 = tpu.matmul %0, %28, %cst {dimension_numbers = #tpu.dot_dimension_numbers<[1], [0], [0], [1], [0, 0, 1, 1], [], []>} : vector<4x36xbf16>, vector<36x768xbf16>, vector<4x768xf32> -> vector<4x768xf32>
    %c0_15 = arith.constant 0 : index
    %c0_16 = arith.constant 0 : index
    %30 = vector.load %arg4[%c0_15, %c0_16] : memref<4x1xf32, #tpu.memory_space<vmem>>, vector<4x1xf32>
    %31 = vector.broadcast %30 : vector<4x1xf32> to vector<4x768xf32>
    %32 = arith.addf %29, %31 : vector<4x768xf32>
    %cst_17 = arith.constant 0.000000e+00 : f32
    %33 = vector.broadcast %cst_17 : f32 to vector<4x768xf32>
    %34 = arith.maximumf %32, %33 : vector<4x768xf32>
    %c0_18 = arith.constant 0 : index
    %c0_19 = arith.constant 0 : index
    %35 = vector.load %arg6[%c0_18, %c0_19] : memref<1x768xf32, #tpu.memory_space<vmem>>, vector<1x768xf32>
    %36 = vector.broadcast %35 : vector<1x768xf32> to vector<4x768xf32>
    %37 = arith.mulf %34, %36 : vector<4x768xf32>
    %c0_20 = arith.constant 0 : index
    %c0_21 = arith.constant 0 : index
    %38 = vector.load %arg3[%c0_20, %c0_21] : memref<4x36xbf16, #tpu.memory_space<vmem>>, vector<4x36xbf16>
    %c19_i32_22 = arith.constant 19 : i32
    %39 = tpu.dynamic_rotate %37 by %c19_i32_22 dim 1 : vector<4x768xf32>, i32 -> vector<4x768xf32>
    %40 = arith.truncf %39 : vector<4x768xf32> to vector<4x768xbf16>
    %c0_23 = arith.constant 0 : index
    %c0_24 = arith.constant 0 : index
    %41 = vector.load %arg8[%c0_23, %c0_24] : memref<36x768xbf16, #tpu.memory_space<vmem>>, vector<4x768xbf16>
    tpu.vector_store %arg8[%c0_23, %c0_24], %40 {strides = array<i32>} : memref<36x768xbf16, #tpu.memory_space<vmem>>, vector<4x768xbf16>,
    %c18_i32_25 = arith.constant 18 : i32
    %42 = tpu.dynamic_rotate %37 by %c18_i32_25 dim 1 : vector<4x768xf32>, i32 -> vector<4x768xf32>
    %43 = arith.truncf %42 : vector<4x768xf32> to vector<4x768xbf16>
    %c4_26 = arith.constant 4 : index
    %c0_27 = arith.constant 0 : index
    %44 = vector.load %arg8[%c4_26, %c0_27] : memref<36x768xbf16, #tpu.memory_space<vmem>>, vector<4x768xbf16>
    tpu.vector_store %arg8[%c4_26, %c0_27], %43 {strides = array<i32>} : memref<36x768xbf16, #tpu.memory_space<vmem>>, vector<4x768xbf16>,
    %c17_i32_28 = arith.constant 17 : i32
    %45 = tpu.dynamic_rotate %37 by %c17_i32_28 dim 1 : vector<4x768xf32>, i32 -> vector<4x768xf32>
    %46 = arith.truncf %45 : vector<4x768xf32> to vector<4x768xbf16>
    %c8_29 = arith.constant 8 : index
    %c0_30 = arith.constant 0 : index
    %47 = vector.load %arg8[%c8_29, %c0_30] : memref<36x768xbf16, #tpu.memory_space<vmem>>, vector<4x768xbf16>
    tpu.vector_store %arg8[%c8_29, %c0_30], %46 {strides = array<i32>} : memref<36x768xbf16, #tpu.memory_space<vmem>>, vector<4x768xbf16>,
    %c1_i32_31 = arith.constant 1 : i32
    %48 = tpu.dynamic_rotate %37 by %c1_i32_31 dim 1 : vector<4x768xf32>, i32 -> vector<4x768xf32>
    %49 = arith.truncf %48 : vector<4x768xf32> to vector<4x768xbf16>
    %c12_32 = arith.constant 12 : index
    %c0_33 = arith.constant 0 : index
    %50 = vector.load %arg8[%c12_32, %c0_33] : memref<36x768xbf16, #tpu.memory_space<vmem>>, vector<4x768xbf16>
    tpu.vector_store %arg8[%c12_32, %c0_33], %49 {strides = array<i32>} : memref<36x768xbf16, #tpu.memory_space<vmem>>, vector<4x768xbf16>,
    %51 = arith.truncf %37 : vector<4x768xf32> to vector<4x768xbf16>
    %c16_34 = arith.constant 16 : index
    %c0_35 = arith.constant 0 : index
    %52 = vector.load %arg8[%c16_34, %c0_35] : memref<36x768xbf16, #tpu.memory_space<vmem>>, vector<4x768xbf16>
    tpu.vector_store %arg8[%c16_34, %c0_35], %51 {strides = array<i32>} : memref<36x768xbf16, #tpu.memory_space<vmem>>, vector<4x768xbf16>,
    %c767_i32_36 = arith.constant 767 : i32
    %53 = tpu.dynamic_rotate %37 by %c767_i32_36 dim 1 : vector<4x768xf32>, i32 -> vector<4x768xf32>
    %54 = arith.truncf %53 : vector<4x768xf32> to vector<4x768xbf16>
    %c20_37 = arith.constant 20 : index
    %c0_38 = arith.constant 0 : index
    %55 = vector.load %arg8[%c20_37, %c0_38] : memref<36x768xbf16, #tpu.memory_space<vmem>>, vector<4x768xbf16>
    tpu.vector_store %arg8[%c20_37, %c0_38], %54 {strides = array<i32>} : memref<36x768xbf16, #tpu.memory_space<vmem>>, vector<4x768xbf16>,
    %c751_i32_39 = arith.constant 751 : i32
    %56 = tpu.dynamic_rotate %37 by %c751_i32_39 dim 1 : vector<4x768xf32>, i32 -> vector<4x768xf32>
    %57 = arith.truncf %56 : vector<4x768xf32> to vector<4x768xbf16>
    %c24_40 = arith.constant 24 : index
    %c0_41 = arith.constant 0 : index
    %58 = vector.load %arg8[%c24_40, %c0_41] : memref<36x768xbf16, #tpu.memory_space<vmem>>, vector<4x768xbf16>
    tpu.vector_store %arg8[%c24_40, %c0_41], %57 {strides = array<i32>} : memref<36x768xbf16, #tpu.memory_space<vmem>>, vector<4x768xbf16>,
    %c750_i32_42 = arith.constant 750 : i32
    %59 = tpu.dynamic_rotate %37 by %c750_i32_42 dim 1 : vector<4x768xf32>, i32 -> vector<4x768xf32>
    %60 = arith.truncf %59 : vector<4x768xf32> to vector<4x768xbf16>
    %c28_43 = arith.constant 28 : index
    %c0_44 = arith.constant 0 : index
    %61 = vector.load %arg8[%c28_43, %c0_44] : memref<36x768xbf16, #tpu.memory_space<vmem>>, vector<4x768xbf16>
    tpu.vector_store %arg8[%c28_43, %c0_44], %60 {strides = array<i32>} : memref<36x768xbf16, #tpu.memory_space<vmem>>, vector<4x768xbf16>,
    %c749_i32_45 = arith.constant 749 : i32
    %62 = tpu.dynamic_rotate %37 by %c749_i32_45 dim 1 : vector<4x768xf32>, i32 -> vector<4x768xf32>
    %63 = arith.truncf %62 : vector<4x768xf32> to vector<4x768xbf16>
    %c32_46 = arith.constant 32 : index
    %c0_47 = arith.constant 0 : index
    %64 = vector.load %arg8[%c32_46, %c0_47] : memref<36x768xbf16, #tpu.memory_space<vmem>>, vector<4x768xbf16>
    tpu.vector_store %arg8[%c32_46, %c0_47], %63 {strides = array<i32>} : memref<36x768xbf16, #tpu.memory_space<vmem>>, vector<4x768xbf16>,
    %c0_48 = arith.constant 0 : index
    %c0_49 = arith.constant 0 : index
    %65 = vector.load %arg8[%c0_48, %c0_49] : memref<36x768xbf16, #tpu.memory_space<vmem>>, vector<36x768xbf16>
    %cst_50 = arith.constant dense<0.000000e+00> : vector<4x768xf32>
    %66 = tpu.matmul %38, %65, %cst_50 {dimension_numbers = #tpu.dot_dimension_numbers<[1], [0], [0], [1], [0, 0, 1, 1], [], []>} : vector<4x36xbf16>, vector<36x768xbf16>, vector<4x768xf32> -> vector<4x768xf32>
    %c0_51 = arith.constant 0 : index
    %c0_52 = arith.constant 0 : index
    %67 = vector.load %arg5[%c0_51, %c0_52] : memref<4x1xf32, #tpu.memory_space<vmem>>, vector<4x1xf32>
    %68 = vector.broadcast %67 : vector<4x1xf32> to vector<4x768xf32>
    %69 = arith.addf %66, %68 : vector<4x768xf32>
    %c0_53 = arith.constant 0 : index
    %c0_54 = arith.constant 0 : index
    %70 = vector.load %arg1[%c0_53, %c0_54] : memref<4x768xf32, #tpu.memory_space<vmem>>, vector<4x768xf32>
    %71 = arith.addf %69, %70 : vector<4x768xf32>
    %cst_55 = arith.constant 0.000000e+00 : f32
    %72 = vector.broadcast %cst_55 : f32 to vector<4x768xf32>
    %73 = arith.maximumf %71, %72 : vector<4x768xf32>
    %c0_56 = arith.constant 0 : index
    %c0_57 = arith.constant 0 : index
    %74 = vector.load %arg7[%c0_56, %c0_57] : memref<4x768xf32, #tpu.memory_space<vmem>>, vector<4x768xf32>
    tpu.vector_store %arg7[%c0_56, %c0_57], %73 {strides = array<i32>} : memref<4x768xf32, #tpu.memory_space<vmem>>, vector<4x768xf32>,
    return
  }
  func.func @transform_0(%arg0: i32) -> (i32, i32) {
    %c0_i32 = arith.constant 0 : i32
    %c0_i32_0 = arith.constant 0 : i32
    return %c0_i32, %arg0 : i32, i32
  }
  func.func @transform_1(%arg0: i32) -> (i32, i32) {
    %c0_i32 = arith.constant 0 : i32
    %c0_i32_0 = arith.constant 0 : i32
    %c0_i32_1 = arith.constant 0 : i32
    return %c0_i32, %c0_i32_0 : i32, i32
  }
  func.func @transform_2(%arg0: i32) -> (i32, i32) {
    %c0_i32 = arith.constant 0 : i32
    %c0_i32_0 = arith.constant 0 : i32
    %c0_i32_1 = arith.constant 0 : i32
    return %c0_i32, %c0_i32_0 : i32, i32
  }
  func.func @transform_3(%arg0: i32) -> (i32, i32) {
    %c0_i32 = arith.constant 0 : i32
    %c0_i32_0 = arith.constant 0 : i32
    %c0_i32_1 = arith.constant 0 : i32
    return %c0_i32, %c0_i32_0 : i32, i32
  }
  func.func @transform_4(%arg0: i32) -> (i32, i32) {
    %c0_i32 = arith.constant 0 : i32
    %c0_i32_0 = arith.constant 0 : i32
    %c0_i32_1 = arith.constant 0 : i32
    return %c0_i32, %c0_i32_0 : i32, i32
  }
  func.func @transform_5(%arg0: i32) -> (i32, i32) {
    %c0_i32 = arith.constant 0 : i32
    %c0_i32_0 = arith.constant 0 : i32
    %c0_i32_1 = arith.constant 0 : i32
    return %c0_i32, %c0_i32_0 : i32, i32
  }
  func.func @transform_6(%arg0: i32) -> (i32, i32) {
    %c0_i32 = arith.constant 0 : i32
    %c0_i32_0 = arith.constant 0 : i32
    return %c0_i32, %arg0 : i32, i32
  }
}

</mosaic_0001>

<llo_original>
// kernel: tpu_custom_call.1
$region0: #{tpu_custom_call.1}
  #allocation0 [shape = 'u32[]', space=smem, size = 0x4, offset = 0x4, fixed_abs, tag = 'smem constant byte address 0x4 - core index']
  #allocation1 [shape = 'u32[144,128]{1,0:T(1,128)}', space=vmem, size = 0x12000, scoped, tag = 'internal scratch']
  #allocation2 [shape = 'bf16[36,768]{1,0:T(8,128)(2,1)}', space=vmem, size = 0xf000, scoped, tag = 'scratch operand']
  %s0 = inlined_call_operand.hbm [shape: f32[4,768], index: 0, kind: input, shape index: {}]
  %s1 = inlined_call_operand.vmem [shape: bf16[4,36], index: 1, kind: input, shape index: {}]
  %s2 = inlined_call_operand.vmem [shape: bf16[4,36], index: 2, kind: input, shape index: {}]
  %s3 = inlined_call_operand.vmem [shape: f32[4,1], index: 3, kind: input, shape index: {}]
  %s4 = inlined_call_operand.vmem [shape: f32[4,1], index: 4, kind: input, shape index: {}]
  %s5 = inlined_call_operand.vmem [shape: f32[1,768], index: 5, kind: input, shape index: {}]
  %s6 = inlined_call_operand.hbm [shape: f32[4,768], index: 6, kind: output, shape index: {}]
  %s7 = sld [smem:[#allocation0]]
  $region38: #{tpu_custom_call.1} parent=0
    _
  %s9 = ssub.s32 1, %s7
  %s10 = scalar_select 0, %s9, %s7
  $region1: #{tpu_custom_call.1} parent=0
    #allocation3 [shape = 'u8[12288]{0}', space=vmem, size = 0x3000, scoped, tag = 'input window, operand 0, single buffered']
    #allocation4 [shape = 's32[1]{0}', space=sflag, size = 0x4, scoped, tag = 'scoped memory for tpu_custom_call.1']
    #allocation5 [shape = 's32[1]{0}', space=sflag, size = 0x4, scoped, tag = 'scoped memory for tpu_custom_call.1']
    #allocation6 [shape = 'u8[12288]{0}', space=vmem, size = 0x3000, scoped, tag = 'output window, operand 0, single buffered']
    %11 = vsyncpa [#allocation4], 0
    %12 = vsyncpa [#allocation5], 0
    // Predicated region
    $region2: #{tpu_custom_call.1} parent=1 // pred_check
      _
    $region3: #{tpu_custom_call.1} parent=1 // pred_check_branch
      %14 = sbr.rel (0) target = $region5
    $region4: #{tpu_custom_call.1} parent=1 // pred_region
      %s16 = ssub.s32 384, 384
      %17 = vsyncadd [#allocation4], %s16
      %s19 = sshll.u32 [#allocation3], 4
      %s20 = int_to_ptr.vmem [resolvable:$true] %s19
      %22 = dma.hbm_to_vmem [thread:$0]  %s0, 384, %s20, [#allocation4]
    $region5: #{tpu_custom_call.1} parent=1 // pred_fallthru
      _
    // Predicated region
    $region6: #{tpu_custom_call.1} parent=1 // pred_check
      _
    $region7: #{tpu_custom_call.1} parent=1 // pred_check_branch
      %24 = sbr.rel (0) target = $region9
    $region8: #{tpu_custom_call.1} parent=1 // pred_region
      _
    $region9: #{tpu_custom_call.1} parent=1 // pred_fallthru
      _
    // Predicated region
    $region10: #{tpu_custom_call.1} parent=1 // pred_check
      _
    $region11: #{tpu_custom_call.1} parent=1 // pred_check_branch
      %26 = sbr.rel (0) target = $region13
    $region12: #{tpu_custom_call.1} parent=1 // pred_region
      _
    $region13: #{tpu_custom_call.1} parent=1 // pred_fallthru
      _
    // Predicated region
    $region14: #{tpu_custom_call.1} parent=1 // pred_check
      _
    $region15: #{tpu_custom_call.1} parent=1 // pred_check_branch
      %28 = sbr.rel (0) target = $region17
    $region16: #{tpu_custom_call.1} parent=1 // pred_region
      _
    $region17: #{tpu_custom_call.1} parent=1 // pred_fallthru
      _
    // Predicated region
    $region18: #{tpu_custom_call.1} parent=1 // pred_check
      _
    $region19: #{tpu_custom_call.1} parent=1 // pred_check_branch
      %30 = sbr.rel (0) target = $region21
    $region20: #{tpu_custom_call.1} parent=1 // pred_region
      _
    $region21: #{tpu_custom_call.1} parent=1 // pred_fallthru
      _
    // Predicated region
    $region22: #{tpu_custom_call.1} parent=1 // pred_check
      _
    $region23: #{tpu_custom_call.1} parent=1 // pred_check_branch
      %32 = sbr.rel (0) target = $region25
    $region24: #{tpu_custom_call.1} parent=1 // pred_region
      _
    $region25: #{tpu_custom_call.1} parent=1 // pred_fallthru
      _
    // Predicated region
    $region26: #{tpu_custom_call.1} parent=1 // pred_check
      _
    $region27: #{tpu_custom_call.1} parent=1 // pred_check_branch
      %34 = sbr.rel (0) target = $region29
    $region28: #{tpu_custom_call.1} parent=1 // pred_region
      %35 = dma.done [#allocation4], 384
    $region29: #{tpu_custom_call.1} parent=1 // pred_fallthru
      _
    %v37 = vld [vmem:[%s1] sm:$0x3]
    %v38 = vld [vmem:[#allocation3] sm:$0xff]
    %v39 = vld [vmem:[#allocation3 + $0x8] sm:$0xff]
    %v40 = vld [vmem:[#allocation3 + $0x10] sm:$0xff]
    %v44 = vcombine.high %v38, %v38
    %v45 = vcombine.high %v39, %v39
    %v46 = vcombine.high %v40, %v40
    %50 = vrot.lane.b32.xlu0 %v38, 19
    %v51 = vpop.permute.xlu0 %50
    %52 = vrot.lane.b32.xlu0 %v44, 19
    %v53 = vpop.permute.xlu0 %52
    %54 = vrot.lane.b32.xlu0 %v39, 19
    %v55 = vpop.permute.xlu0 %54
    %56 = vrot.lane.b32.xlu0 %v45, 19
    %v57 = vpop.permute.xlu0 %56
    %58 = vrot.lane.b32.xlu0 %v40, 19
    %v59 = vpop.permute.xlu0 %58
    %60 = vrot.lane.b32.xlu0 %v46, 19
    %v61 = vpop.permute.xlu0 %60
    %v62 = vlaneseq
    %v63 = vand.u32 %v62, 127
    %vm64 = vcmp.lt.s32.totalorder %v63, 19
    %v65 = vsel %vm64, %v59, %v61
    %v66 = vsel %vm64, %v57, %v59
    %v67 = vsel %vm64, %v55, %v57
    %v68 = vsel %vm64, %v53, %v55
    %v69 = vsel %vm64, %v51, %v53
    %v70 = vsel %vm64, %v61, %v51
    %v71 = vpack.c.bf16 %v70, %v70
    %v72 = vpack.c.bf16 %v69, %v69
    %v73 = vpack.c.bf16 %v68, %v68
    %v74 = vpack.c.bf16 %v67, %v67
    %v75 = vpack.c.bf16 %v66, %v66
    %v76 = vpack.c.bf16 %v65, %v65
    %v83 = vunpack.c.l.b16 %v71
    %v84 = vunpack.c.l.b16 %v72
    %v85 = vunpack.c.l.b16 %v73
    %v86 = vunpack.c.l.b16 %v74
    %v87 = vunpack.c.l.b16 %v75
    %v88 = vunpack.c.l.b16 %v76
    %v89 = vpack.c.b16 %v84, %v83
    %v90 = vpack.c.b16 %v86, %v85
    %v91 = vpack.c.b16 %v88, %v87
    %95 = vst [vmem:[#allocation2] sm:$0x33] %v89
    %96 = vst [vmem:[#allocation2 + $0x8] sm:$0x33] %v90
    %97 = vst [vmem:[#allocation2 + $0x10] sm:$0x33] %v91
    %98 = vrot.lane.b32.xlu0 %v38, 18
    %v99 = vpop.permute.xlu0 %98
    %100 = vrot.lane.b32.xlu0 %v44, 18
    %v101 = vpop.permute.xlu0 %100
    %102 = vrot.lane.b32.xlu0 %v39, 18
    %v103 = vpop.permute.xlu0 %102
    %104 = vrot.lane.b32.xlu0 %v45, 18
    %v105 = vpop.permute.xlu0 %104
    %106 = vrot.lane.b32.xlu0 %v40, 18
    %v107 = vpop.permute.xlu0 %106
    %108 = vrot.lane.b32.xlu0 %v46, 18
    %v109 = vpop.permute.xlu0 %108
    %vm110 = vcmp.lt.s32.totalorder %v63, 18
    %v111 = vsel %vm110, %v107, %v109
    %v112 = vsel %vm110, %v105, %v107
    %v113 = vsel %vm110, %v103, %v105
    %v114 = vsel %vm110, %v101, %v103
    %v115 = vsel %vm110, %v99, %v101
    %v116 = vsel %vm110, %v109, %v99
    %v117 = vpack.c.bf16 %v116, %v116
    %v118 = vpack.c.bf16 %v115, %v115
    %v119 = vpack.c.bf16 %v114, %v114
    %v120 = vpack.c.bf16 %v113, %v113
    %v121 = vpack.c.bf16 %v112, %v112
    %v122 = vpack.c.bf16 %v111, %v111
    %v129 = vunpack.c.l.b16 %v117
    %v130 = vunpack.c.l.b16 %v118
    %v131 = vunpack.c.l.b16 %v119
    %v132 = vunpack.c.l.b16 %v120
    %v133 = vunpack.c.l.b16 %v121
    %v134 = vunpack.c.l.b16 %v122
    %v135 = vpack.c.b16 %v130, %v129
    %v136 = vpack.c.b16 %v132, %v131
    %v137 = vpack.c.b16 %v134, %v133
    %v138 = vrot.slane %v135, 6
    %v139 = vrot.slane %v136, 6
    %v140 = vrot.slane %v137, 6
    %144 = vst [vmem:[#allocation2] sm:$0xcc] %v138
    %145 = vst [vmem:[#allocation2 + $0x8] sm:$0xcc] %v139
    %146 = vst [vmem:[#allocation2 + $0x10] sm:$0xcc] %v140
    %147 = vrot.lane.b32.xlu0 %v38, 17
    %v148 = vpop.permute.xlu0 %147
    %149 = vrot.lane.b32.xlu0 %v44, 17
    %v150 = vpop.permute.xlu0 %149
    %151 = vrot.lane.b32.xlu0 %v39, 17
    %v152 = vpop.permute.xlu0 %151
    %153 = vrot.lane.b32.xlu0 %v45, 17
    %v154 = vpop.permute.xlu0 %153
    %155 = vrot.lane.b32.xlu0 %v40, 17
    %v156 = vpop.permute.xlu0 %155
    %157 = vrot.lane.b32.xlu0 %v46, 17
    %v158 = vpop.permute.xlu0 %157
    %vm159 = vcmp.lt.s32.totalorder %v63, 17
    %v160 = vsel %vm159, %v156, %v158
    %v161 = vsel %vm159, %v154, %v156
    %v162 = vsel %vm159, %v152, %v154
    %v163 = vsel %vm159, %v150, %v152
    %v164 = vsel %vm159, %v148, %v150
    %v165 = vsel %vm159, %v158, %v148
    %v166 = vpack.c.bf16 %v165, %v165
    %v167 = vpack.c.bf16 %v164, %v164
    %v168 = vpack.c.bf16 %v163, %v163
    %v169 = vpack.c.bf16 %v162, %v162
    %v170 = vpack.c.bf16 %v161, %v161
    %v171 = vpack.c.bf16 %v160, %v160
    %v178 = vunpack.c.l.b16 %v166
    %v179 = vunpack.c.l.b16 %v167
    %v180 = vunpack.c.l.b16 %v168
    %v181 = vunpack.c.l.b16 %v169
    %v182 = vunpack.c.l.b16 %v170
    %v183 = vunpack.c.l.b16 %v171
    %v184 = vpack.c.b16 %v179, %v178
    %v185 = vpack.c.b16 %v181, %v180
    %v186 = vpack.c.b16 %v183, %v182
    %190 = vst [vmem:[#allocation2 + $0x18] sm:$0x33] %v184
    %191 = vst [vmem:[#allocation2 + $0x20] sm:$0x33] %v185
    %192 = vst [vmem:[#allocation2 + $0x28] sm:$0x33] %v186
    %193 = vrot.lane.b32.xlu0 %v38, 1
    %v194 = vpop.permute.xlu0 %193
    %195 = vrot.lane.b32.xlu0 %v44, 1
    %v196 = vpop.permute.xlu0 %195
    %197 = vrot.lane.b32.xlu0 %v39, 1
    %v198 = vpop.permute.xlu0 %197
    %199 = vrot.lane.b32.xlu0 %v45, 1
    %v200 = vpop.permute.xlu0 %199
    %201 = vrot.lane.b32.xlu0 %v40, 1
    %v202 = vpop.permute.xlu0 %201
    %203 = vrot.lane.b32.xlu0 %v46, 1
    %v204 = vpop.permute.xlu0 %203
    %vm205 = vcmp.lt.s32.totalorder %v63, 1
    %v206 = vsel %vm205, %v202, %v204
    %v207 = vsel %vm205, %v200, %v202
    %v208 = vsel %vm205, %v198, %v200
    %v209 = vsel %vm205, %v196, %v198
    %v210 = vsel %vm205, %v194, %v196
    %v211 = vsel %vm205, %v204, %v194
    %v212 = vpack.c.bf16 %v211, %v211
    %v213 = vpack.c.bf16 %v210, %v210
    %v214 = vpack.c.bf16 %v209, %v209
    %v215 = vpack.c.bf16 %v208, %v208
    %v216 = vpack.c.bf16 %v207, %v207
    %v217 = vpack.c.bf16 %v206, %v206
    %v224 = vunpack.c.l.b16 %v212
    %v225 = vunpack.c.l.b16 %v213
    %v226 = vunpack.c.l.b16 %v214
    %v227 = vunpack.c.l.b16 %v215
    %v228 = vunpack.c.l.b16 %v216
    %v229 = vunpack.c.l.b16 %v217
    %v230 = vpack.c.b16 %v225, %v224
    %v231 = vpack.c.b16 %v227, %v226
    %v232 = vpack.c.b16 %v229, %v228
    %v233 = vrot.slane %v230, 6
    %v234 = vrot.slane %v231, 6
    %v235 = vrot.slane %v232, 6
    %239 = vst [vmem:[#allocation2 + $0x18] sm:$0xcc] %v233
    %240 = vst [vmem:[#allocation2 + $0x20] sm:$0xcc] %v234
    %241 = vst [vmem:[#allocation2 + $0x28] sm:$0xcc] %v235
    %v242 = vpack.c.bf16 %v38, %v38
    %v243 = vpack.c.bf16 %v44, %v44
    %v244 = vpack.c.bf16 %v39, %v39
    %v245 = vpack.c.bf16 %v45, %v45
    %v246 = vpack.c.bf16 %v40, %v40
    %v247 = vpack.c.bf16 %v46, %v46
    %v254 = vunpack.c.l.b16 %v242
    %v255 = vunpack.c.l.b16 %v243
    %v256 = vunpack.c.l.b16 %v244
    %v257 = vunpack.c.l.b16 %v245
    %v258 = vunpack.c.l.b16 %v246
    %v259 = vunpack.c.l.b16 %v247
    %v260 = vpack.c.b16 %v255, %v254
    %v261 = vpack.c.b16 %v257, %v256
    %v262 = vpack.c.b16 %v259, %v258
    %266 = vst [vmem:[#allocation2 + $0x30] sm:$0x33] %v260
    %267 = vst [vmem:[#allocation2 + $0x38] sm:$0x33] %v261
    %268 = vst [vmem:[#allocation2 + $0x40] sm:$0x33] %v262
    %269 = vrot.lane.b32.xlu0 %v38, 127
    %v270 = vpop.permute.xlu0 %269
    %271 = vrot.lane.b32.xlu0 %v44, 127
    %v272 = vpop.permute.xlu0 %271
    %273 = vrot.lane.b32.xlu0 %v39, 127
    %v274 = vpop.permute.xlu0 %273
    %275 = vrot.lane.b32.xlu0 %v45, 127
    %v276 = vpop.permute.xlu0 %275
    %277 = vrot.lane.b32.xlu0 %v40, 127
    %v278 = vpop.permute.xlu0 %277
    %279 = vrot.lane.b32.xlu0 %v46, 127
    %v280 = vpop.permute.xlu0 %279
    %vm281 = vcmp.lt.s32.totalorder %v63, 127
    %v282 = vsel %vm281, %v278, %v280
    %v283 = vsel %vm281, %v276, %v278
    %v284 = vsel %vm281, %v274, %v276
    %v285 = vsel %vm281, %v272, %v274
    %v286 = vsel %vm281, %v270, %v272
    %v287 = vsel %vm281, %v280, %v270
    %v288 = vpack.c.bf16 %v286, %v286
    %v289 = vpack.c.bf16 %v285, %v285
    %v290 = vpack.c.bf16 %v284, %v284
    %v291 = vpack.c.bf16 %v283, %v283
    %v292 = vpack.c.bf16 %v282, %v282
    %v293 = vpack.c.bf16 %v287, %v287
    %v300 = vunpack.c.l.b16 %v288
    %v301 = vunpack.c.l.b16 %v289
    %v302 = vunpack.c.l.b16 %v290
    %v303 = vunpack.c.l.b16 %v291
    %v304 = vunpack.c.l.b16 %v292
    %v305 = vunpack.c.l.b16 %v293
    %v306 = vpack.c.b16 %v301, %v300
    %v307 = vpack.c.b16 %v303, %v302
    %v308 = vpack.c.b16 %v305, %v304
    %v309 = vrot.slane %v306, 6
    %v310 = vrot.slane %v307, 6
    %v311 = vrot.slane %v308, 6
    %315 = vst [vmem:[#allocation2 + $0x30] sm:$0xcc] %v309
    %316 = vst [vmem:[#allocation2 + $0x38] sm:$0xcc] %v310
    %317 = vst [vmem:[#allocation2 + $0x40] sm:$0xcc] %v311
    %318 = vrot.lane.b32.xlu0 %v38, 111
    %v319 = vpop.permute.xlu0 %318
    %320 = vrot.lane.b32.xlu0 %v44, 111
    %v321 = vpop.permute.xlu0 %320
    %322 = vrot.lane.b32.xlu0 %v39, 111
    %v323 = vpop.permute.xlu0 %322
    %324 = vrot.lane.b32.xlu0 %v45, 111
    %v325 = vpop.permute.xlu0 %324
    %326 = vrot.lane.b32.xlu0 %v40, 111
    %v327 = vpop.permute.xlu0 %326
    %328 = vrot.lane.b32.xlu0 %v46, 111
    %v329 = vpop.permute.xlu0 %328
    %vm330 = vcmp.lt.s32.totalorder %v63, 111
    %v331 = vsel %vm330, %v327, %v329
    %v332 = vsel %vm330, %v325, %v327
    %v333 = vsel %vm330, %v323, %v325
    %v334 = vsel %vm330, %v321, %v323
    %v335 = vsel %vm330, %v319, %v321
    %v336 = vsel %vm330, %v329, %v319
    %v337 = vpack.c.bf16 %v335, %v335
    %v338 = vpack.c.bf16 %v334, %v334
    %v339 = vpack.c.bf16 %v333, %v333
    %v340 = vpack.c.bf16 %v332, %v332
    %v341 = vpack.c.bf16 %v331, %v331
    %v342 = vpack.c.bf16 %v336, %v336
    %v349 = vunpack.c.l.b16 %v337
    %v350 = vunpack.c.l.b16 %v338
    %v351 = vunpack.c.l.b16 %v339
    %v352 = vunpack.c.l.b16 %v340
    %v353 = vunpack.c.l.b16 %v341
    %v354 = vunpack.c.l.b16 %v342
    %v355 = vpack.c.b16 %v350, %v349
    %v356 = vpack.c.b16 %v352, %v351
    %v357 = vpack.c.b16 %v354, %v353
    %361 = vst [vmem:[#allocation2 + $0x48] sm:$0x33] %v355
    %362 = vst [vmem:[#allocation2 + $0x50] sm:$0x33] %v356
    %363 = vst [vmem:[#allocation2 + $0x58] sm:$0x33] %v357
    %364 = vrot.lane.b32.xlu0 %v38, 110
    %v365 = vpop.permute.xlu0 %364
    %366 = vrot.lane.b32.xlu0 %v44, 110
    %v367 = vpop.permute.xlu0 %366
    %368 = vrot.lane.b32.xlu0 %v39, 110
    %v369 = vpop.permute.xlu0 %368
    %370 = vrot.lane.b32.xlu0 %v45, 110
    %v371 = vpop.permute.xlu0 %370
    %372 = vrot.lane.b32.xlu0 %v40, 110
    %v373 = vpop.permute.xlu0 %372
    %374 = vrot.lane.b32.xlu0 %v46, 110
    %v375 = vpop.permute.xlu0 %374
    %vm376 = vcmp.lt.s32.totalorder %v63, 110
    %v377 = vsel %vm376, %v373, %v375
    %v378 = vsel %vm376, %v371, %v373
    %v379 = vsel %vm376, %v369, %v371
    %v380 = vsel %vm376, %v367, %v369
    %v381 = vsel %vm376, %v365, %v367
    %v382 = vsel %vm376, %v375, %v365
    %v383 = vpack.c.bf16 %v381, %v381
    %v384 = vpack.c.bf16 %v380, %v380
    %v385 = vpack.c.bf16 %v379, %v379
    %v386 = vpack.c.bf16 %v378, %v378
    %v387 = vpack.c.bf16 %v377, %v377
    %v388 = vpack.c.bf16 %v382, %v382
    %v395 = vunpack.c.l.b16 %v383
    %v396 = vunpack.c.l.b16 %v384
    %v397 = vunpack.c.l.b16 %v385
    %v398 = vunpack.c.l.b16 %v386
    %v399 = vunpack.c.l.b16 %v387
    %v400 = vunpack.c.l.b16 %v388
    %v401 = vpack.c.b16 %v396, %v395
    %v402 = vpack.c.b16 %v398, %v397
    %v403 = vpack.c.b16 %v400, %v399
    %v404 = vrot.slane %v401, 6
    %v405 = vrot.slane %v402, 6
    %v406 = vrot.slane %v403, 6
    %410 = vst [vmem:[#allocation2 + $0x48] sm:$0xcc] %v404
    %411 = vst [vmem:[#allocation2 + $0x50] sm:$0xcc] %v405
    %412 = vst [vmem:[#allocation2 + $0x58] sm:$0xcc] %v406
    %413 = vrot.lane.b32.xlu0 %v38, 109
    %v414 = vpop.permute.xlu0 %413
    %415 = vrot.lane.b32.xlu0 %v44, 109
    %v416 = vpop.permute.xlu0 %415
    %417 = vrot.lane.b32.xlu0 %v39, 109
    %v418 = vpop.permute.xlu0 %417
    %419 = vrot.lane.b32.xlu0 %v45, 109
    %v420 = vpop.permute.xlu0 %419
    %421 = vrot.lane.b32.xlu0 %v40, 109
    %v422 = vpop.permute.xlu0 %421
    %423 = vrot.lane.b32.xlu0 %v46, 109
    %v424 = vpop.permute.xlu0 %423
    %vm425 = vcmp.lt.s32.totalorder %v63, 109
    %v426 = vsel %vm425, %v422, %v424
    %v427 = vsel %vm425, %v420, %v422
    %v428 = vsel %vm425, %v418, %v420
    %v429 = vsel %vm425, %v416, %v418
    %v430 = vsel %vm425, %v414, %v416
    %v431 = vsel %vm425, %v424, %v414
    %v432 = vpack.c.bf16 %v430, %v430
    %v433 = vpack.c.bf16 %v429, %v429
    %v434 = vpack.c.bf16 %v428, %v428
    %v435 = vpack.c.bf16 %v427, %v427
    %v436 = vpack.c.bf16 %v426, %v426
    %v437 = vpack.c.bf16 %v431, %v431
    %v444 = vunpack.c.l.b16 %v432
    %v445 = vunpack.c.l.b16 %v433
    %v446 = vunpack.c.l.b16 %v434
    %v447 = vunpack.c.l.b16 %v435
    %v448 = vunpack.c.l.b16 %v436
    %v449 = vunpack.c.l.b16 %v437
    %v450 = vpack.c.b16 %v445, %v444
    %v451 = vpack.c.b16 %v447, %v446
    %v452 = vpack.c.b16 %v449, %v448
    %456 = vst [vmem:[#allocation2 + $0x60] sm:$0x33] %v450
    %457 = vst [vmem:[#allocation2 + $0x68] sm:$0x33] %v451
    %458 = vst [vmem:[#allocation2 + $0x70] sm:$0x33] %v452
    %v459 = vld [vmem:[#allocation2] sm:$0xff]
    %v460 = vld [vmem:[#allocation2 + $0x8] sm:$0xff]
    %v461 = vld [vmem:[#allocation2 + $0x10] sm:$0xff]
    %v462 = vld [vmem:[#allocation2 + $0x18] sm:$0xff]
    %v463 = vld [vmem:[#allocation2 + $0x20] sm:$0xff]
    %v464 = vld [vmem:[#allocation2 + $0x28] sm:$0xff]
    %v465 = vld [vmem:[#allocation2 + $0x30] sm:$0xff]
    %v466 = vld [vmem:[#allocation2 + $0x38] sm:$0xff]
    %v467 = vld [vmem:[#allocation2 + $0x40] sm:$0xff]
    %v468 = vld [vmem:[#allocation2 + $0x48] sm:$0xff]
    %v469 = vld [vmem:[#allocation2 + $0x50] sm:$0xff]
    %v470 = vld [vmem:[#allocation2 + $0x58] sm:$0xff]
    %v471 = vld [vmem:[#allocation2 + $0x60] sm:$0x33]
    %v472 = vld [vmem:[#allocation2 + $0x68] sm:$0x33]
    %v473 = vld [vmem:[#allocation2 + $0x70] sm:$0x33]
    %v474 = vld [vmem:[%s3] sm:$0xf]
    %476 = vset.pattern.permute.xlu0 0
    %477 = vperm.xlu0 %476, %v474
    %v478 = vpop.permute.xlu0 %477
    %v495 = vunpack.c.l.b16 %v459
    %v496 = vunpack.c.h.b16 %v459
    %v497 = vunpack.c.l.b16 %v460
    %v498 = vunpack.c.h.b16 %v460
    %v499 = vunpack.c.l.b16 %v461
    %v500 = vunpack.c.h.b16 %v461
    %v501 = vunpack.c.l.b16 %v462
    %v502 = vunpack.c.h.b16 %v462
    %v503 = vunpack.c.l.b16 %v463
    %v504 = vunpack.c.h.b16 %v463
    %v505 = vunpack.c.l.b16 %v464
    %v506 = vunpack.c.h.b16 %v464
    %v507 = vunpack.c.l.b16 %v465
    %v508 = vunpack.c.h.b16 %v465
    %v509 = vunpack.c.l.b16 %v466
    %v510 = vunpack.c.h.b16 %v466
    %v511 = vunpack.c.l.b16 %v467
    %v512 = vunpack.c.h.b16 %v467
    %v513 = vunpack.c.l.b16 %v468
    %v514 = vunpack.c.h.b16 %v468
    %v515 = vunpack.c.l.b16 %v469
    %v516 = vunpack.c.h.b16 %v469
    %v517 = vunpack.c.l.b16 %v470
    %v518 = vunpack.c.h.b16 %v470
    %v519 = vunpack.c.l.b16 %v471
    %v520 = vunpack.c.h.b16 %v471
    %v521 = vunpack.c.l.b16 %v472
    %v522 = vunpack.c.h.b16 %v472
    %v523 = vunpack.c.l.b16 %v473
    %v524 = vunpack.c.h.b16 %v473
    %v525 = vpack.c.b16 %v501, %v495
    %v526 = vpack.c.b16 %v502, %v496
    %v527 = vpack.c.b16 %v503, %v497
    %v528 = vpack.c.b16 %v504, %v498
    %v529 = vpack.c.b16 %v505, %v499
    %v530 = vpack.c.b16 %v506, %v500
    %v531 = vpack.c.b16 %v513, %v507
    %v532 = vpack.c.b16 %v514, %v508
    %v533 = vpack.c.b16 %v515, %v509
    %v534 = vpack.c.b16 %v516, %v510
    %v535 = vpack.c.b16 %v517, %v511
    %v536 = vpack.c.b16 %v518, %v512
    %v537 = vpack.c.b16 %v519, %v519
    %v538 = vpack.c.b16 %v520, %v520
    %v539 = vpack.c.b16 %v521, %v521
    %v540 = vpack.c.b16 %v522, %v522
    %v541 = vpack.c.b16 %v523, %v523
    %v542 = vpack.c.b16 %v524, %v524
    %vm555 = vcmask 293888
    %v557 = vsel %vm555, %v37, 0
    %vm559 = vcmask 1041408
    %v561 = vsel %vm559, %v537, 0
    %v564 = vsel %vm559, %v538, 0
    %v567 = vsel %vm559, %v539, 0
    %v570 = vsel %vm559, %v540, 0
    %v573 = vsel %vm559, %v541, 0
    %v576 = vsel %vm559, %v542, 0
    %578 = vmatprep.subr.bf16.mxu0 0
    %579 = vmatpush1.bf16.msra.mxu0 0
    %580 = vmatprep.subr.bf16.mxu0 0
    %581 = vmatpush1.bf16.msra.mxu0 0
    %582 = vmatprep.subr.bf16.mxu0 0
    %583 = vmatpush1.bf16.msra.mxu0 0
    %584 = vmatprep.subr.bf16.mxu0 0
    %585 = vmatpush1.bf16.msra.mxu0 0
    %586 = vmatprep.subr.bf16.mxu0 0
    %587 = vmatpush1.bf16.msra.mxu0 0
    %588 = vmatprep.subr.bf16.mxu0 %v564
    %589 = vmatpush1.bf16.msra.mxu0 %v561
    %590 = vmatprep.subr.bf16.mxu0 %v532
    %591 = vmatpush1.bf16.msra.mxu0 %v531
    %592 = vmatprep.subr.bf16.mxu0 %v526
    %593 = vmatpush1.bf16.msra.mxu0 %v525
    %594 = vmatprep.subr.bf16.mxu0 0
    %595 = vmatpush2.bf16.msra.mxu0 0
    %596 = vmatprep.subr.bf16.mxu0 0
    %597 = vmatpush2.bf16.msra.mxu0 0
    %598 = vmatprep.subr.bf16.mxu0 0
    %599 = vmatpush2.bf16.msra.mxu0 0
    %600 = vmatprep.subr.bf16.mxu0 0
    %601 = vmatpush2.bf16.msra.mxu0 0
    %602 = vmatprep.subr.bf16.mxu0 0
    %603 = vmatpush2.bf16.msra.mxu0 0
    %604 = vmatprep.subr.bf16.mxu0 0
    %605 = vmatpush2.bf16.msra.mxu0 0
    %606 = vmatprep.subr.bf16.mxu0 0
    %607 = vmatpush2.bf16.msra.mxu0 0
    %608 = vmatprep.subr.bf16.mxu0 0
    %609 = vmatpush2.bf16.msra.mxu0 0
    %610 = vmatprep.mubr.bf16.mxu0 0
    %611 = vmatmul.mubr.bf16.gmra.mxu0 %v557
    %v612 = vpop.f32.mrf.mxu0
    %v613 = vadd.f32 %v478, %v612
    %v614 = vpop.f32.mrf.mxu0
    %v615 = vadd.f32 %v478, %v614
    %v616 = vpop.f32.mrf.mxu0
    %v617 = vpop.f32.mrf.mxu0
    %618 = vdwg.mxu0
    %619 = vmatprep.subr.bf16.mxu0 0
    %620 = vmatpush1.bf16.msra.mxu0 0
    %621 = vmatprep.subr.bf16.mxu0 0
    %622 = vmatpush1.bf16.msra.mxu0 0
    %623 = vmatprep.subr.bf16.mxu0 0
    %624 = vmatpush1.bf16.msra.mxu0 0
    %625 = vmatprep.subr.bf16.mxu0 0
    %626 = vmatpush1.bf16.msra.mxu0 0
    %627 = vmatprep.subr.bf16.mxu0 0
    %628 = vmatpush1.bf16.msra.mxu0 0
    %629 = vmatprep.subr.bf16.mxu0 %v570
    %630 = vmatpush1.bf16.msra.mxu0 %v567
    %631 = vmatprep.subr.bf16.mxu0 %v534
    %632 = vmatpush1.bf16.msra.mxu0 %v533
    %633 = vmatprep.subr.bf16.mxu0 %v528
    %634 = vmatpush1.bf16.msra.mxu0 %v527
    %635 = vmatprep.subr.bf16.mxu0 0
    %636 = vmatpush2.bf16.msra.mxu0 0
    %637 = vmatprep.subr.bf16.mxu0 0
    %638 = vmatpush2.bf16.msra.mxu0 0
    %639 = vmatprep.subr.bf16.mxu0 0
    %640 = vmatpush2.bf16.msra.mxu0 0
    %641 = vmatprep.subr.bf16.mxu0 0
    %642 = vmatpush2.bf16.msra.mxu0 0
    %643 = vmatprep.subr.bf16.mxu0 0
    %644 = vmatpush2.bf16.msra.mxu0 0
    %645 = vmatprep.subr.bf16.mxu0 0
    %646 = vmatpush2.bf16.msra.mxu0 0
    %647 = vmatprep.subr.bf16.mxu0 0
    %648 = vmatpush2.bf16.msra.mxu0 0
    %649 = vmatprep.subr.bf16.mxu0 0
    %650 = vmatpush2.bf16.msra.mxu0 0
    %651 = vmatprep.mubr.bf16.mxu0 0
    %652 = vmatmul.mubr.bf16.gmra.mxu0 %v557
    %v653 = vpop.f32.mrf.mxu0
    %v654 = vadd.f32 %v478, %v653
    %v655 = vpop.f32.mrf.mxu0
    %v656 = vadd.f32 %v478, %v655
    %v657 = vpop.f32.mrf.mxu0
    %v658 = vpop.f32.mrf.mxu0
    %659 = vdwg.mxu0
    %660 = vmatprep.subr.bf16.mxu0 0
    %661 = vmatpush1.bf16.msra.mxu0 0
    %662 = vmatprep.subr.bf16.mxu0 0
    %663 = vmatpush1.bf16.msra.mxu0 0
    %664 = vmatprep.subr.bf16.mxu0 0
    %665 = vmatpush1.bf16.msra.mxu0 0
    %666 = vmatprep.subr.bf16.mxu0 0
    %667 = vmatpush1.bf16.msra.mxu0 0
    %668 = vmatprep.subr.bf16.mxu0 0
    %669 = vmatpush1.bf16.msra.mxu0 0
    %670 = vmatprep.subr.bf16.mxu0 %v576
    %671 = vmatpush1.bf16.msra.mxu0 %v573
    %672 = vmatprep.subr.bf16.mxu0 %v536
    %673 = vmatpush1.bf16.msra.mxu0 %v535
    %674 = vmatprep.subr.bf16.mxu0 %v530
    %675 = vmatpush1.bf16.msra.mxu0 %v529
    %676 = vmatprep.subr.bf16.mxu0 0
    %677 = vmatpush2.bf16.msra.mxu0 0
    %678 = vmatprep.subr.bf16.mxu0 0
    %679 = vmatpush2.bf16.msra.mxu0 0
    %680 = vmatprep.subr.bf16.mxu0 0
    %681 = vmatpush2.bf16.msra.mxu0 0
    %682 = vmatprep.subr.bf16.mxu0 0
    %683 = vmatpush2.bf16.msra.mxu0 0
    %684 = vmatprep.subr.bf16.mxu0 0
    %685 = vmatpush2.bf16.msra.mxu0 0
    %686 = vmatprep.subr.bf16.mxu0 0
    %687 = vmatpush2.bf16.msra.mxu0 0
    %688 = vmatprep.subr.bf16.mxu0 0
    %689 = vmatpush2.bf16.msra.mxu0 0
    %690 = vmatprep.subr.bf16.mxu0 0
    %691 = vmatpush2.bf16.msra.mxu0 0
    %692 = vmatprep.mubr.bf16.mxu0 0
    %693 = vmatmul.mubr.bf16.gmra.mxu0 %v557
    %v694 = vpop.f32.mrf.mxu0
    %v695 = vadd.f32 %v478, %v694
    %v696 = vpop.f32.mrf.mxu0
    %v697 = vadd.f32 %v478, %v696
    %v698 = vpop.f32.mrf.mxu0
    %v699 = vpop.f32.mrf.mxu0
    %700 = vdwg.mxu0
    %v701 = vmax.f32 %v613, 0.0
    %v702 = vmax.f32 %v615, 0.0
    %v703 = vmax.f32 %v654, 0.0
    %v704 = vmax.f32 %v656, 0.0
    %v705 = vmax.f32 %v695, 0.0
    %v706 = vmax.f32 %v697, 0.0
    %v707 = vld [vmem:[%s5] sm:$0x3f]
    %v709 = vlaneseq
    %v710 = vshrl.u32 %v709, 7
    %v711 = vsub.s32 0, %v710
    %v712 = vrot.slane %v707, %v711
    %v713 = vlaneseq
    %v714 = vshrl.u32 %v713, 7
    %v715 = vsub.s32 1, %v714
    %v716 = vrot.slane %v707, %v715
    %v717 = vlaneseq
    %v718 = vshrl.u32 %v717, 7
    %v719 = vsub.s32 2, %v718
    %v720 = vrot.slane %v707, %v719
    %v721 = vlaneseq
    %v722 = vshrl.u32 %v721, 7
    %v723 = vsub.s32 3, %v722
    %v724 = vrot.slane %v707, %v723
    %v725 = vlaneseq
    %v726 = vshrl.u32 %v725, 7
    %v727 = vsub.s32 4, %v726
    %v728 = vrot.slane %v707, %v727
    %v729 = vlaneseq
    %v730 = vshrl.u32 %v729, 7
    %v731 = vsub.s32 5, %v730
    %v732 = vrot.slane %v707, %v731
    %v739 = vmul.f32 %v701, %v712
    %v740 = vmul.f32 %v702, %v716
    %v741 = vmul.f32 %v703, %v720
    %v742 = vmul.f32 %v704, %v724
    %v743 = vmul.f32 %v705, %v728
    %v744 = vmul.f32 %v706, %v732
    %v745 = vld [vmem:[%s2] sm:$0x3]
    %746 = vrot.lane.b32.xlu0 %v739, 19
    %v747 = vpop.permute.xlu0 %746
    %748 = vrot.lane.b32.xlu0 %v740, 19
    %v749 = vpop.permute.xlu0 %748
    %750 = vrot.lane.b32.xlu0 %v741, 19
    %v751 = vpop.permute.xlu0 %750
    %752 = vrot.lane.b32.xlu0 %v742, 19
    %v753 = vpop.permute.xlu0 %752
    %754 = vrot.lane.b32.xlu0 %v743, 19
    %v755 = vpop.permute.xlu0 %754
    %756 = vrot.lane.b32.xlu0 %v744, 19
    %v757 = vpop.permute.xlu0 %756
    %v758 = vsel %vm64, %v755, %v757
    %v759 = vsel %vm64, %v753, %v755
    %v760 = vsel %vm64, %v751, %v753
    %v761 = vsel %vm64, %v749, %v751
    %v762 = vsel %vm64, %v747, %v749
    %v763 = vsel %vm64, %v757, %v747
    %v764 = vpack.c.bf16 %v763, %v763
    %v765 = vpack.c.bf16 %v762, %v762
    %v766 = vpack.c.bf16 %v761, %v761
    %v767 = vpack.c.bf16 %v760, %v760
    %v768 = vpack.c.bf16 %v759, %v759
    %v769 = vpack.c.bf16 %v758, %v758
    %v776 = vunpack.c.l.b16 %v764
    %v777 = vunpack.c.l.b16 %v765
    %v778 = vunpack.c.l.b16 %v766
    %v779 = vunpack.c.l.b16 %v767
    %v780 = vunpack.c.l.b16 %v768
    %v781 = vunpack.c.l.b16 %v769
    %v782 = vpack.c.b16 %v777, %v776
    %v783 = vpack.c.b16 %v779, %v778
    %v784 = vpack.c.b16 %v781, %v780
    %788 = vst [vmem:[#allocation2] sm:$0x33] %v782
    %789 = vst [vmem:[#allocation2 + $0x8] sm:$0x33] %v783
    %790 = vst [vmem:[#allocation2 + $0x10] sm:$0x33] %v784
    %791 = vrot.lane.b32.xlu0 %v739, 18
    %v792 = vpop.permute.xlu0 %791
    %793 = vrot.lane.b32.xlu0 %v740, 18
    %v794 = vpop.permute.xlu0 %793
    %795 = vrot.lane.b32.xlu0 %v741, 18
    %v796 = vpop.permute.xlu0 %795
    %797 = vrot.lane.b32.xlu0 %v742, 18
    %v798 = vpop.permute.xlu0 %797
    %799 = vrot.lane.b32.xlu0 %v743, 18
    %v800 = vpop.permute.xlu0 %799
    %801 = vrot.lane.b32.xlu0 %v744, 18
    %v802 = vpop.permute.xlu0 %801
    %v803 = vsel %vm110, %v800, %v802
    %v804 = vsel %vm110, %v798, %v800
    %v805 = vsel %vm110, %v796, %v798
    %v806 = vsel %vm110, %v794, %v796
    %v807 = vsel %vm110, %v792, %v794
    %v808 = vsel %vm110, %v802, %v792
    %v809 = vpack.c.bf16 %v808, %v808
    %v810 = vpack.c.bf16 %v807, %v807
    %v811 = vpack.c.bf16 %v806, %v806
    %v812 = vpack.c.bf16 %v805, %v805
    %v813 = vpack.c.bf16 %v804, %v804
    %v814 = vpack.c.bf16 %v803, %v803
    %v821 = vunpack.c.l.b16 %v809
    %v822 = vunpack.c.l.b16 %v810
    %v823 = vunpack.c.l.b16 %v811
    %v824 = vunpack.c.l.b16 %v812
    %v825 = vunpack.c.l.b16 %v813
    %v826 = vunpack.c.l.b16 %v814
    %v827 = vpack.c.b16 %v822, %v821
    %v828 = vpack.c.b16 %v824, %v823
    %v829 = vpack.c.b16 %v826, %v825
    %v830 = vrot.slane %v827, 6
    %v831 = vrot.slane %v828, 6
    %v832 = vrot.slane %v829, 6
    %836 = vst [vmem:[#allocation2] sm:$0xcc] %v830
    %837 = vst [vmem:[#allocation2 + $0x8] sm:$0xcc] %v831
    %838 = vst [vmem:[#allocation2 + $0x10] sm:$0xcc] %v832
    %839 = vrot.lane.b32.xlu0 %v739, 17
    %v840 = vpop.permute.xlu0 %839
    %841 = vrot.lane.b32.xlu0 %v740, 17
    %v842 = vpop.permute.xlu0 %841
    %843 = vrot.lane.b32.xlu0 %v741, 17
    %v844 = vpop.permute.xlu0 %843
    %845 = vrot.lane.b32.xlu0 %v742, 17
    %v846 = vpop.permute.xlu0 %845
    %847 = vrot.lane.b32.xlu0 %v743, 17
    %v848 = vpop.permute.xlu0 %847
    %849 = vrot.lane.b32.xlu0 %v744, 17
    %v850 = vpop.permute.xlu0 %849
    %v851 = vsel %vm159, %v848, %v850
    %v852 = vsel %vm159, %v846, %v848
    %v853 = vsel %vm159, %v844, %v846
    %v854 = vsel %vm159, %v842, %v844
    %v855 = vsel %vm159, %v840, %v842
    %v856 = vsel %vm159, %v850, %v840
    %v857 = vpack.c.bf16 %v856, %v856
    %v858 = vpack.c.bf16 %v855, %v855
    %v859 = vpack.c.bf16 %v854, %v854
    %v860 = vpack.c.bf16 %v853, %v853
    %v861 = vpack.c.bf16 %v852, %v852
    %v862 = vpack.c.bf16 %v851, %v851
    %v869 = vunpack.c.l.b16 %v857
    %v870 = vunpack.c.l.b16 %v858
    %v871 = vunpack.c.l.b16 %v859
    %v872 = vunpack.c.l.b16 %v860
    %v873 = vunpack.c.l.b16 %v861
    %v874 = vunpack.c.l.b16 %v862
    %v875 = vpack.c.b16 %v870, %v869
    %v876 = vpack.c.b16 %v872, %v871
    %v877 = vpack.c.b16 %v874, %v873
    %881 = vst [vmem:[#allocation2 + $0x18] sm:$0x33] %v875
    %882 = vst [vmem:[#allocation2 + $0x20] sm:$0x33] %v876
    %883 = vst [vmem:[#allocation2 + $0x28] sm:$0x33] %v877
    %884 = vrot.lane.b32.xlu0 %v739, 1
    %v885 = vpop.permute.xlu0 %884
    %886 = vrot.lane.b32.xlu0 %v740, 1
    %v887 = vpop.permute.xlu0 %886
    %888 = vrot.lane.b32.xlu0 %v741, 1
    %v889 = vpop.permute.xlu0 %888
    %890 = vrot.lane.b32.xlu0 %v742, 1
    %v891 = vpop.permute.xlu0 %890
    %892 = vrot.lane.b32.xlu0 %v743, 1
    %v893 = vpop.permute.xlu0 %892
    %894 = vrot.lane.b32.xlu0 %v744, 1
    %v895 = vpop.permute.xlu0 %894
    %v896 = vsel %vm205, %v893, %v895
    %v897 = vsel %vm205, %v891, %v893
    %v898 = vsel %vm205, %v889, %v891
    %v899 = vsel %vm205, %v887, %v889
    %v900 = vsel %vm205, %v885, %v887
    %v901 = vsel %vm205, %v895, %v885
    %v902 = vpack.c.bf16 %v901, %v901
    %v903 = vpack.c.bf16 %v900, %v900
    %v904 = vpack.c.bf16 %v899, %v899
    %v905 = vpack.c.bf16 %v898, %v898
    %v906 = vpack.c.bf16 %v897, %v897
    %v907 = vpack.c.bf16 %v896, %v896
    %v914 = vunpack.c.l.b16 %v902
    %v915 = vunpack.c.l.b16 %v903
    %v916 = vunpack.c.l.b16 %v904
    %v917 = vunpack.c.l.b16 %v905
    %v918 = vunpack.c.l.b16 %v906
    %v919 = vunpack.c.l.b16 %v907
    %v920 = vpack.c.b16 %v915, %v914
    %v921 = vpack.c.b16 %v917, %v916
    %v922 = vpack.c.b16 %v919, %v918
    %v923 = vrot.slane %v920, 6
    %v924 = vrot.slane %v921, 6
    %v925 = vrot.slane %v922, 6
    %929 = vst [vmem:[#allocation2 + $0x18] sm:$0xcc] %v923
    %930 = vst [vmem:[#allocation2 + $0x20] sm:$0xcc] %v924
    %931 = vst [vmem:[#allocation2 + $0x28] sm:$0xcc] %v925
    %v932 = vpack.c.bf16 %v739, %v739
    %v933 = vpack.c.bf16 %v740, %v740
    %v934 = vpack.c.bf16 %v741, %v741
    %v935 = vpack.c.bf16 %v742, %v742
    %v936 = vpack.c.bf16 %v743, %v743
    %v937 = vpack.c.bf16 %v744, %v744
    %v944 = vunpack.c.l.b16 %v932
    %v945 = vunpack.c.l.b16 %v933
    %v946 = vunpack.c.l.b16 %v934
    %v947 = vunpack.c.l.b16 %v935
    %v948 = vunpack.c.l.b16 %v936
    %v949 = vunpack.c.l.b16 %v937
    %v950 = vpack.c.b16 %v945, %v944
    %v951 = vpack.c.b16 %v947, %v946
    %v952 = vpack.c.b16 %v949, %v948
    %956 = vst [vmem:[#allocation2 + $0x30] sm:$0x33] %v950
    %957 = vst [vmem:[#allocation2 + $0x38] sm:$0x33] %v951
    %958 = vst [vmem:[#allocation2 + $0x40] sm:$0x33] %v952
    %959 = vrot.lane.b32.xlu0 %v739, 127
    %v960 = vpop.permute.xlu0 %959
    %961 = vrot.lane.b32.xlu0 %v740, 127
    %v962 = vpop.permute.xlu0 %961
    %963 = vrot.lane.b32.xlu0 %v741, 127
    %v964 = vpop.permute.xlu0 %963
    %965 = vrot.lane.b32.xlu0 %v742, 127
    %v966 = vpop.permute.xlu0 %965
    %967 = vrot.lane.b32.xlu0 %v743, 127
    %v968 = vpop.permute.xlu0 %967
    %969 = vrot.lane.b32.xlu0 %v744, 127
    %v970 = vpop.permute.xlu0 %969
    %v971 = vsel %vm281, %v968, %v970
    %v972 = vsel %vm281, %v966, %v968
    %v973 = vsel %vm281, %v964, %v966
    %v974 = vsel %vm281, %v962, %v964
    %v975 = vsel %vm281, %v960, %v962
    %v976 = vsel %vm281, %v970, %v960
    %v977 = vpack.c.bf16 %v975, %v975
    %v978 = vpack.c.bf16 %v974, %v974
    %v979 = vpack.c.bf16 %v973, %v973
    %v980 = vpack.c.bf16 %v972, %v972
    %v981 = vpack.c.bf16 %v971, %v971
    %v982 = vpack.c.bf16 %v976, %v976
    %v989 = vunpack.c.l.b16 %v977
    %v990 = vunpack.c.l.b16 %v978
    %v991 = vunpack.c.l.b16 %v979
    %v992 = vunpack.c.l.b16 %v980
    %v993 = vunpack.c.l.b16 %v981
    %v994 = vunpack.c.l.b16 %v982
    %v995 = vpack.c.b16 %v990, %v989
    %v996 = vpack.c.b16 %v992, %v991
    %v997 = vpack.c.b16 %v994, %v993
    %v998 = vrot.slane %v995, 6
    %v999 = vrot.slane %v996, 6
    %v1000 = vrot.slane %v997, 6
    %1004 = vst [vmem:[#allocation2 + $0x30] sm:$0xcc] %v998
    %1005 = vst [vmem:[#allocation2 + $0x38] sm:$0xcc] %v999
    %1006 = vst [vmem:[#allocation2 + $0x40] sm:$0xcc] %v1000
    %1007 = vrot.lane.b32.xlu0 %v739, 111
    %v1008 = vpop.permute.xlu0 %1007
    %1009 = vrot.lane.b32.xlu0 %v740, 111
    %v1010 = vpop.permute.xlu0 %1009
    %1011 = vrot.lane.b32.xlu0 %v741, 111
    %v1012 = vpop.permute.xlu0 %1011
    %1013 = vrot.lane.b32.xlu0 %v742, 111
    %v1014 = vpop.permute.xlu0 %1013
    %1015 = vrot.lane.b32.xlu0 %v743, 111
    %v1016 = vpop.permute.xlu0 %1015
    %1017 = vrot.lane.b32.xlu0 %v744, 111
    %v1018 = vpop.permute.xlu0 %1017
    %v1019 = vsel %vm330, %v1016, %v1018
    %v1020 = vsel %vm330, %v1014, %v1016
    %v1021 = vsel %vm330, %v1012, %v1014
    %v1022 = vsel %vm330, %v1010, %v1012
    %v1023 = vsel %vm330, %v1008, %v1010
    %v1024 = vsel %vm330, %v1018, %v1008
    %v1025 = vpack.c.bf16 %v1023, %v1023
    %v1026 = vpack.c.bf16 %v1022, %v1022
    %v1027 = vpack.c.bf16 %v1021, %v1021
    %v1028 = vpack.c.bf16 %v1020, %v1020
    %v1029 = vpack.c.bf16 %v1019, %v1019
    %v1030 = vpack.c.bf16 %v1024, %v1024
    %v1037 = vunpack.c.l.b16 %v1025
    %v1038 = vunpack.c.l.b16 %v1026
    %v1039 = vunpack.c.l.b16 %v1027
    %v1040 = vunpack.c.l.b16 %v1028
    %v1041 = vunpack.c.l.b16 %v1029
    %v1042 = vunpack.c.l.b16 %v1030
    %v1043 = vpack.c.b16 %v1038, %v1037
    %v1044 = vpack.c.b16 %v1040, %v1039
    %v1045 = vpack.c.b16 %v1042, %v1041
    %1049 = vst [vmem:[#allocation2 + $0x48] sm:$0x33] %v1043
    %1050 = vst [vmem:[#allocation2 + $0x50] sm:$0x33] %v1044
    %1051 = vst [vmem:[#allocation2 + $0x58] sm:$0x33] %v1045
    %1052 = vrot.lane.b32.xlu0 %v739, 110
    %v1053 = vpop.permute.xlu0 %1052
    %1054 = vrot.lane.b32.xlu0 %v740, 110
    %v1055 = vpop.permute.xlu0 %1054
    %1056 = vrot.lane.b32.xlu0 %v741, 110
    %v1057 = vpop.permute.xlu0 %1056
    %1058 = vrot.lane.b32.xlu0 %v742, 110
    %v1059 = vpop.permute.xlu0 %1058
    %1060 = vrot.lane.b32.xlu0 %v743, 110
    %v1061 = vpop.permute.xlu0 %1060
    %1062 = vrot.lane.b32.xlu0 %v744, 110
    %v1063 = vpop.permute.xlu0 %1062
    %v1064 = vsel %vm376, %v1061, %v1063
    %v1065 = vsel %vm376, %v1059, %v1061
    %v1066 = vsel %vm376, %v1057, %v1059
    %v1067 = vsel %vm376, %v1055, %v1057
    %v1068 = vsel %vm376, %v1053, %v1055
    %v1069 = vsel %vm376, %v1063, %v1053
    %v1070 = vpack.c.bf16 %v1068, %v1068
    %v1071 = vpack.c.bf16 %v1067, %v1067
    %v1072 = vpack.c.bf16 %v1066, %v1066
    %v1073 = vpack.c.bf16 %v1065, %v1065
    %v1074 = vpack.c.bf16 %v1064, %v1064
    %v1075 = vpack.c.bf16 %v1069, %v1069
    %v1082 = vunpack.c.l.b16 %v1070
    %v1083 = vunpack.c.l.b16 %v1071
    %v1084 = vunpack.c.l.b16 %v1072
    %v1085 = vunpack.c.l.b16 %v1073
    %v1086 = vunpack.c.l.b16 %v1074
    %v1087 = vunpack.c.l.b16 %v1075
    %v1088 = vpack.c.b16 %v1083, %v1082
    %v1089 = vpack.c.b16 %v1085, %v1084
    %v1090 = vpack.c.b16 %v1087, %v1086
    %v1091 = vrot.slane %v1088, 6
    %v1092 = vrot.slane %v1089, 6
    %v1093 = vrot.slane %v1090, 6
    %1097 = vst [vmem:[#allocation2 + $0x48] sm:$0xcc] %v1091
    %1098 = vst [vmem:[#allocation2 + $0x50] sm:$0xcc] %v1092
    %1099 = vst [vmem:[#allocation2 + $0x58] sm:$0xcc] %v1093
    %1100 = vrot.lane.b32.xlu0 %v739, 109
    %v1101 = vpop.permute.xlu0 %1100
    %1102 = vrot.lane.b32.xlu0 %v740, 109
    %v1103 = vpop.permute.xlu0 %1102
    %1104 = vrot.lane.b32.xlu0 %v741, 109
    %v1105 = vpop.permute.xlu0 %1104
    %1106 = vrot.lane.b32.xlu0 %v742, 109
    %v1107 = vpop.permute.xlu0 %1106
    %1108 = vrot.lane.b32.xlu0 %v743, 109
    %v1109 = vpop.permute.xlu0 %1108
    %1110 = vrot.lane.b32.xlu0 %v744, 109
    %v1111 = vpop.permute.xlu0 %1110
    %v1112 = vsel %vm425, %v1109, %v1111
    %v1113 = vsel %vm425, %v1107, %v1109
    %v1114 = vsel %vm425, %v1105, %v1107
    %v1115 = vsel %vm425, %v1103, %v1105
    %v1116 = vsel %vm425, %v1101, %v1103
    %v1117 = vsel %vm425, %v1111, %v1101
    %v1118 = vpack.c.bf16 %v1116, %v1116
    %v1119 = vpack.c.bf16 %v1115, %v1115
    %v1120 = vpack.c.bf16 %v1114, %v1114
    %v1121 = vpack.c.bf16 %v1113, %v1113
    %v1122 = vpack.c.bf16 %v1112, %v1112
    %v1123 = vpack.c.bf16 %v1117, %v1117
    %v1130 = vunpack.c.l.b16 %v1118
    %v1131 = vunpack.c.l.b16 %v1119
    %v1132 = vunpack.c.l.b16 %v1120
    %v1133 = vunpack.c.l.b16 %v1121
    %v1134 = vunpack.c.l.b16 %v1122
    %v1135 = vunpack.c.l.b16 %v1123
    %v1136 = vpack.c.b16 %v1131, %v1130
    %v1137 = vpack.c.b16 %v1133, %v1132
    %v1138 = vpack.c.b16 %v1135, %v1134
    %1142 = vst [vmem:[#allocation2 + $0x60] sm:$0x33] %v1136
    %1143 = vst [vmem:[#allocation2 + $0x68] sm:$0x33] %v1137
    %1144 = vst [vmem:[#allocation2 + $0x70] sm:$0x33] %v1138
    %v1145 = vld [vmem:[#allocation2] sm:$0xff]
    %v1146 = vld [vmem:[#allocation2 + $0x8] sm:$0xff]
    %v1147 = vld [vmem:[#allocation2 + $0x10] sm:$0xff]
    %v1148 = vld [vmem:[#allocation2 + $0x18] sm:$0xff]
    %v1149 = vld [vmem:[#allocation2 + $0x20] sm:$0xff]
    %v1150 = vld [vmem:[#allocation2 + $0x28] sm:$0xff]
    %v1151 = vld [vmem:[#allocation2 + $0x30] sm:$0xff]
    %v1152 = vld [vmem:[#allocation2 + $0x38] sm:$0xff]
    %v1153 = vld [vmem:[#allocation2 + $0x40] sm:$0xff]
    %v1154 = vld [vmem:[#allocation2 + $0x48] sm:$0xff]
    %v1155 = vld [vmem:[#allocation2 + $0x50] sm:$0xff]
    %v1156 = vld [vmem:[#allocation2 + $0x58] sm:$0xff]
    %v1157 = vld [vmem:[#allocation2 + $0x60] sm:$0x33]
    %v1158 = vld [vmem:[#allocation2 + $0x68] sm:$0x33]
    %v1159 = vld [vmem:[#allocation2 + $0x70] sm:$0x33]
    %v1160 = vld [vmem:[%s4] sm:$0xf]
    %1162 = vset.pattern.permute.xlu0 0
    %1163 = vperm.xlu0 %1162, %v1160
    %v1164 = vpop.permute.xlu0 %1163
    %v1181 = vunpack.c.l.b16 %v1145
    %v1182 = vunpack.c.h.b16 %v1145
    %v1183 = vunpack.c.l.b16 %v1146
    %v1184 = vunpack.c.h.b16 %v1146
    %v1185 = vunpack.c.l.b16 %v1147
    %v1186 = vunpack.c.h.b16 %v1147
    %v1187 = vunpack.c.l.b16 %v1148
    %v1188 = vunpack.c.h.b16 %v1148
    %v1189 = vunpack.c.l.b16 %v1149
    %v1190 = vunpack.c.h.b16 %v1149
    %v1191 = vunpack.c.l.b16 %v1150
    %v1192 = vunpack.c.h.b16 %v1150
    %v1193 = vunpack.c.l.b16 %v1151
    %v1194 = vunpack.c.h.b16 %v1151
    %v1195 = vunpack.c.l.b16 %v1152
    %v1196 = vunpack.c.h.b16 %v1152
    %v1197 = vunpack.c.l.b16 %v1153
    %v1198 = vunpack.c.h.b16 %v1153
    %v1199 = vunpack.c.l.b16 %v1154
    %v1200 = vunpack.c.h.b16 %v1154
    %v1201 = vunpack.c.l.b16 %v1155
    %v1202 = vunpack.c.h.b16 %v1155
    %v1203 = vunpack.c.l.b16 %v1156
    %v1204 = vunpack.c.h.b16 %v1156
    %v1205 = vunpack.c.l.b16 %v1157
    %v1206 = vunpack.c.h.b16 %v1157
    %v1207 = vunpack.c.l.b16 %v1158
    %v1208 = vunpack.c.h.b16 %v1158
    %v1209 = vunpack.c.l.b16 %v1159
    %v1210 = vunpack.c.h.b16 %v1159
    %v1211 = vpack.c.b16 %v1187, %v1181
    %v1212 = vpack.c.b16 %v1188, %v1182
    %v1213 = vpack.c.b16 %v1189, %v1183
    %v1214 = vpack.c.b16 %v1190, %v1184
    %v1215 = vpack.c.b16 %v1191, %v1185
    %v1216 = vpack.c.b16 %v1192, %v1186
    %v1217 = vpack.c.b16 %v1199, %v1193
    %v1218 = vpack.c.b16 %v1200, %v1194
    %v1219 = vpack.c.b16 %v1201, %v1195
    %v1220 = vpack.c.b16 %v1202, %v1196
    %v1221 = vpack.c.b16 %v1203, %v1197
    %v1222 = vpack.c.b16 %v1204, %v1198
    %v1223 = vpack.c.b16 %v1205, %v1205
    %v1224 = vpack.c.b16 %v1206, %v1206
    %v1225 = vpack.c.b16 %v1207, %v1207
    %v1226 = vpack.c.b16 %v1208, %v1208
    %v1227 = vpack.c.b16 %v1209, %v1209
    %v1228 = vpack.c.b16 %v1210, %v1210
    %v1242 = vsel %vm555, %v745, 0
    %v1245 = vsel %vm559, %v1223, 0
    %v1248 = vsel %vm559, %v1224, 0
    %v1251 = vsel %vm559, %v1225, 0
    %v1254 = vsel %vm559, %v1226, 0
    %v1257 = vsel %vm559, %v1227, 0
    %v1260 = vsel %vm559, %v1228, 0
    %1262 = vmatprep.subr.bf16.mxu0 0
    %1263 = vmatpush1.bf16.msra.mxu0 0
    %1264 = vmatprep.subr.bf16.mxu0 0
    %1265 = vmatpush1.bf16.msra.mxu0 0
    %1266 = vmatprep.subr.bf16.mxu0 0
    %1267 = vmatpush1.bf16.msra.mxu0 0
    %1268 = vmatprep.subr.bf16.mxu0 0
    %1269 = vmatpush1.bf16.msra.mxu0 0
    %1270 = vmatprep.subr.bf16.mxu0 0
    %1271 = vmatpush1.bf16.msra.mxu0 0
    %1272 = vmatprep.subr.bf16.mxu0 %v1248
    %1273 = vmatpush1.bf16.msra.mxu0 %v1245
    %1274 = vmatprep.subr.bf16.mxu0 %v1218
    %1275 = vmatpush1.bf16.msra.mxu0 %v1217
    %1276 = vmatprep.subr.bf16.mxu0 %v1212
    %1277 = vmatpush1.bf16.msra.mxu0 %v1211
    %1278 = vmatprep.subr.bf16.mxu0 0
    %1279 = vmatpush2.bf16.msra.mxu0 0
    %1280 = vmatprep.subr.bf16.mxu0 0
    %1281 = vmatpush2.bf16.msra.mxu0 0
    %1282 = vmatprep.subr.bf16.mxu0 0
    %1283 = vmatpush2.bf16.msra.mxu0 0
    %1284 = vmatprep.subr.bf16.mxu0 0
    %1285 = vmatpush2.bf16.msra.mxu0 0
    %1286 = vmatprep.subr.bf16.mxu0 0
    %1287 = vmatpush2.bf16.msra.mxu0 0
    %1288 = vmatprep.subr.bf16.mxu0 0
    %1289 = vmatpush2.bf16.msra.mxu0 0
    %1290 = vmatprep.subr.bf16.mxu0 0
    %1291 = vmatpush2.bf16.msra.mxu0 0
    %1292 = vmatprep.subr.bf16.mxu0 0
    %1293 = vmatpush2.bf16.msra.mxu0 0
    %1294 = vmatprep.mubr.bf16.mxu0 0
    %1295 = vmatmul.mubr.bf16.gmra.mxu0 %v1242
    %v1296 = vpop.f32.mrf.mxu0
    %v1297 = vadd.f32 %v1164, %v1296
    %v1298 = vpop.f32.mrf.mxu0
    %v1299 = vadd.f32 %v1164, %v1298
    %v1300 = vpop.f32.mrf.mxu0
    %v1301 = vpop.f32.mrf.mxu0
    %1302 = vdwg.mxu0
    %1303 = vmatprep.subr.bf16.mxu0 0
    %1304 = vmatpush1.bf16.msra.mxu0 0
    %1305 = vmatprep.subr.bf16.mxu0 0
    %1306 = vmatpush1.bf16.msra.mxu0 0
    %1307 = vmatprep.subr.bf16.mxu0 0
    %1308 = vmatpush1.bf16.msra.mxu0 0
    %1309 = vmatprep.subr.bf16.mxu0 0
    %1310 = vmatpush1.bf16.msra.mxu0 0
    %1311 = vmatprep.subr.bf16.mxu0 0
    %1312 = vmatpush1.bf16.msra.mxu0 0
    %1313 = vmatprep.subr.bf16.mxu0 %v1254
    %1314 = vmatpush1.bf16.msra.mxu0 %v1251
    %1315 = vmatprep.subr.bf16.mxu0 %v1220
    %1316 = vmatpush1.bf16.msra.mxu0 %v1219
    %1317 = vmatprep.subr.bf16.mxu0 %v1214
    %1318 = vmatpush1.bf16.msra.mxu0 %v1213
    %1319 = vmatprep.subr.bf16.mxu0 0
    %1320 = vmatpush2.bf16.msra.mxu0 0
    %1321 = vmatprep.subr.bf16.mxu0 0
    %1322 = vmatpush2.bf16.msra.mxu0 0
    %1323 = vmatprep.subr.bf16.mxu0 0
    %1324 = vmatpush2.bf16.msra.mxu0 0
    %1325 = vmatprep.subr.bf16.mxu0 0
    %1326 = vmatpush2.bf16.msra.mxu0 0
    %1327 = vmatprep.subr.bf16.mxu0 0
    %1328 = vmatpush2.bf16.msra.mxu0 0
    %1329 = vmatprep.subr.bf16.mxu0 0
    %1330 = vmatpush2.bf16.msra.mxu0 0
    %1331 = vmatprep.subr.bf16.mxu0 0
    %1332 = vmatpush2.bf16.msra.mxu0 0
    %1333 = vmatprep.subr.bf16.mxu0 0
    %1334 = vmatpush2.bf16.msra.mxu0 0
    %1335 = vmatprep.mubr.bf16.mxu0 0
    %1336 = vmatmul.mubr.bf16.gmra.mxu0 %v1242
    %v1337 = vpop.f32.mrf.mxu0
    %v1338 = vadd.f32 %v1164, %v1337
    %v1339 = vpop.f32.mrf.mxu0
    %v1340 = vadd.f32 %v1164, %v1339
    %v1341 = vpop.f32.mrf.mxu0
    %v1342 = vpop.f32.mrf.mxu0
    %1343 = vdwg.mxu0
    %1344 = vmatprep.subr.bf16.mxu0 0
    %1345 = vmatpush1.bf16.msra.mxu0 0
    %1346 = vmatprep.subr.bf16.mxu0 0
    %1347 = vmatpush1.bf16.msra.mxu0 0
    %1348 = vmatprep.subr.bf16.mxu0 0
    %1349 = vmatpush1.bf16.msra.mxu0 0
    %1350 = vmatprep.subr.bf16.mxu0 0
    %1351 = vmatpush1.bf16.msra.mxu0 0
    %1352 = vmatprep.subr.bf16.mxu0 0
    %1353 = vmatpush1.bf16.msra.mxu0 0
    %1354 = vmatprep.subr.bf16.mxu0 %v1260
    %1355 = vmatpush1.bf16.msra.mxu0 %v1257
    %1356 = vmatprep.subr.bf16.mxu0 %v1222
    %1357 = vmatpush1.bf16.msra.mxu0 %v1221
    %1358 = vmatprep.subr.bf16.mxu0 %v1216
    %1359 = vmatpush1.bf16.msra.mxu0 %v1215
    %1360 = vmatprep.subr.bf16.mxu0 0
    %1361 = vmatpush2.bf16.msra.mxu0 0
    %1362 = vmatprep.subr.bf16.mxu0 0
    %1363 = vmatpush2.bf16.msra.mxu0 0
    %1364 = vmatprep.subr.bf16.mxu0 0
    %1365 = vmatpush2.bf16.msra.mxu0 0
    %1366 = vmatprep.subr.bf16.mxu0 0
    %1367 = vmatpush2.bf16.msra.mxu0 0
    %1368 = vmatprep.subr.bf16.mxu0 0
    %1369 = vmatpush2.bf16.msra.mxu0 0
    %1370 = vmatprep.subr.bf16.mxu0 0
    %1371 = vmatpush2.bf16.msra.mxu0 0
    %1372 = vmatprep.subr.bf16.mxu0 0
    %1373 = vmatpush2.bf16.msra.mxu0 0
    %1374 = vmatprep.subr.bf16.mxu0 0
    %1375 = vmatpush2.bf16.msra.mxu0 0
    %1376 = vmatprep.mubr.bf16.mxu0 0
    %1377 = vmatmul.mubr.bf16.gmra.mxu0 %v1242
    %v1378 = vpop.f32.mrf.mxu0
    %v1379 = vadd.f32 %v1164, %v1378
    %v1380 = vpop.f32.mrf.mxu0
    %v1381 = vadd.f32 %v1164, %v1380
    %v1382 = vpop.f32.mrf.mxu0
    %v1383 = vpop.f32.mrf.mxu0
    %1384 = vdwg.mxu0
    %v1385 = vld [vmem:[#allocation3] sm:$0xff]
    %v1386 = vld [vmem:[#allocation3 + $0x8] sm:$0xff]
    %v1387 = vld [vmem:[#allocation3 + $0x10] sm:$0xff]
    %v1391 = vcombine.high %v1385, %v1385
    %v1392 = vcombine.high %v1386, %v1386
    %v1393 = vcombine.high %v1387, %v1387
    %v1397 = vadd.f32 %v1297, %v1385
    %v1398 = vadd.f32 %v1299, %v1391
    %v1399 = vadd.f32 %v1338, %v1386
    %v1400 = vadd.f32 %v1340, %v1392
    %v1401 = vadd.f32 %v1379, %v1387
    %v1402 = vadd.f32 %v1381, %v1393
    %v1403 = vmax.f32 %v1397, 0.0
    %v1404 = vmax.f32 %v1398, 0.0
    %v1405 = vmax.f32 %v1399, 0.0
    %v1406 = vmax.f32 %v1400, 0.0
    %v1407 = vmax.f32 %v1401, 0.0
    %v1408 = vmax.f32 %v1402, 0.0
    %v1415 = vcombine.low %v1403, %v1404
    %v1416 = vcombine.low %v1405, %v1406
    %v1417 = vcombine.low %v1407, %v1408
    %1421 = vst [vmem:[#allocation6] sm:$0xff] %v1415
    %1422 = vst [vmem:[#allocation6 + $0x8] sm:$0xff] %v1416
    %1423 = vst [vmem:[#allocation6 + $0x10] sm:$0xff] %v1417
    // Predicated region
    $region30: #{tpu_custom_call.1} parent=1 // pred_check
      _
    $region31: #{tpu_custom_call.1} parent=1 // pred_check_branch
      %1425 = sbr.rel (0) target = $region33
    $region32: #{tpu_custom_call.1} parent=1 // pred_region
      %s1427 = ssub.s32 384, 384
      %1428 = vsyncadd [#allocation5], %s1427
      %s1430 = sshll.u32 [#allocation6], 4
      %s1431 = int_to_ptr.vmem [resolvable:$true] %s1430
      %1433 = dma.vmem_to_hbm [thread:$0]  %s1431, 384, %s6, [#allocation5]
    $region33: #{tpu_custom_call.1} parent=1 // pred_fallthru
      _
    // Predicated region
    $region34: #{tpu_custom_call.1} parent=1 // pred_check
      _
    $region35: #{tpu_custom_call.1} parent=1 // pred_check_branch
      %1435 = sbr.rel (0) target = $region37
    $region36: #{tpu_custom_call.1} parent=1 // pred_region
      %1436 = dma.done [#allocation5], 384
    $region37: #{tpu_custom_call.1} parent=1 // pred_fallthru
      _
    %1437 = vsyncpa [#allocation4], 1
    %1438 = vsyncpa [#allocation5], 1

</llo_original>
